<compile_context>
chip_gen: v5e
topology: v5e:2x2
jax: 0.10.0
libtpu: 0.0.40
codegen_flags: <defaults>
</compile_context>

<pallas_src>
import functools
import math

import jax
import jax.numpy as jnp
from jax.experimental import pallas as pl
from jax.experimental.pallas import tpu as pltpu


_GATE_PERM = (0, 1, 3, 2)          # torch [i, f, g, o]  ->  kernel [i, f, o, g]
_RESIDENT_LIMIT_BYTES = 12 << 20   # use resident-weight kernel below this footprint


def _round_up(x, m):
    return ((x + m - 1) // m) * m


# --------------------------------------------------------------------------
# Kernels
# --------------------------------------------------------------------------
def _resident_lstm_kernel(dt_ref, x_ref, h_ref, c_ref, w_ref, b_ref,
                          hn_ref, cn_ref, *, blend, num_layers, P, H):
    """Whole weight stack resident in VMEM; layer loop unrolled in-kernel."""
    x_cur = x_ref[...]                                     # (Bp, P) bf16, zero-padded
    for layer in range(num_layers):                        # straight-line at trace time
        h = h_ref[layer]                                   # (Bp, H) f32
        c = c_ref[layer]
        xcat = jnp.concatenate([x_cur, h.astype(x_cur.dtype)], axis=1)   # (Bp, P+H) bf16

        # Single fused MXU matmul: bf16 operands, f32 accumulation.
        gates = jnp.dot(xcat, w_ref[layer],
                        preferred_element_type=jnp.float32) + b_ref[layer]

        # Gate order [i, f, o, g]: sigmoid over one contiguous slab, tanh over the rest.
        sig = jax.nn.sigmoid(gates[:, :3 * H])
        i_g = sig[:, 0 * H:1 * H]
        f_g = sig[:, 1 * H:2 * H]
        o_g = sig[:, 2 * H:3 * H]
        g_g = jnp.tanh(gates[:, 3 * H:4 * H])

        c_new = f_g * c + i_g * g_g
        h_new = o_g * jnp.tanh(c_new)

        if blend:                                          # trace-time branch, runtime dt
            dt = dt_ref[0]
            inv = 1.0 / (1.0 + dt)
            hn_ref[layer] = (h + dt * h_new) * inv
            cn_ref[layer] = (c + dt * c_new) * inv
        else:
            hn_ref[layer] = h_new
            cn_ref[layer] = c_new

        if layer + 1 < num_layers:
            # Next layer consumes the UN-blended hidden output (PyTorch semantics).
            h_bf = h_new.astype(jnp.bfloat16)
            if P == H:
                x_cur = h_bf
            else:
                x_cur = jnp.concatenate(
                    [h_bf, jnp.zeros((h_bf.shape[0], P - H), jnp.bfloat16)], axis=1)


def _streamed_lstm_kernel(dt_ref, x_ref, h_ref, c_ref, w_ref, b_ref,
                          hn_ref, cn_ref, xcat_ref, *, blend, P, H):
    """Fallback for large configs: one grid step == one layer, weights streamed."""
    layer = pl.program_id(0)

    @pl.when(layer == 0)
    def _():
        xcat_ref[:, :P] = x_ref[...]

    if P > H:
        # Explicitly clear the [H:P] columns once layers switch to hidden-sized
        # inputs (belt-and-suspenders on top of the zero-padded weight rows).
        @pl.when(layer == 1)
        def _():
            xcat_ref[:, H:P] = jnp.zeros((xcat_ref.shape[0], P - H), xcat_ref.dtype)

    h = h_ref[0]
    c = c_ref[0]
    xcat_ref[:, P:] = h.astype(xcat_ref.dtype)

    gates = jnp.dot(xcat_ref[...], w_ref[0],
                    preferred_element_type=jnp.float32) + b_ref[layer]

    sig = jax.nn.sigmoid(gates[:, :3 * H])
    i_g = sig[:, 0 * H:1 * H]
    f_g = sig[:, 1 * H:2 * H]
    o_g = sig[:, 2 * H:3 * H]
    g_g = jnp.tanh(gates[:, 3 * H:4 * H])

    c_new = f_g * c + i_g * g_g
    h_new = o_g * jnp.tanh(c_new)

    # Un-blended output feeds the next layer.
    xcat_ref[:, :H] = h_new.astype(xcat_ref.dtype)

    if blend:
        dt = dt_ref[0]
        inv = 1.0 / (1.0 + dt)
        hn_ref[0] = (h + dt * h_new) * inv
        cn_ref[0] = (c + dt * c_new) * inv
    else:
        hn_ref[0] = h_new
        cn_ref[0] = c_new


# --------------------------------------------------------------------------
# pallas_call builders
# --------------------------------------------------------------------------
def _vmem_bytes_resident(L, Bp, P, H):
    w = L * (P + H) * 4 * H * 2              # bf16 weight stack
    states = 4 * L * Bp * H * 4              # h, c in + hn, cn out (f32)
    x = Bp * P * 2
    b = L * 4 * H * 4
    work = Bp * (P + H) * 2 + 2 * Bp * 4 * H * 4
    return w + states + x + b + work


def _vmem_bytes_streamed(L, Bp, P, H):
    w = 2 * (P + H) * 4 * H * 2              # double-buffered weight tile
    states = 2 * 4 * Bp * H * 4              # double-buffered h/c/hn/cn tiles
    x = 2 * Bp * P * 2
    b = L * 4 * H * 4
    scratch = Bp * (P + H) * 2
    work = 2 * Bp * 4 * H * 4
    return w + states + x + b + scratch + work


def _clamp_vmem(need):
    return min(max(2 * need, 32 << 20), 60 << 20)   # within v7x 64 MiB physical


@functools.lru_cache(maxsize=None)
def _build_resident_call(num_layers, batch_pad, pad_in, hidden, blend):
    L, Bp, P, H = num_layers, batch_pad, pad_in, hidden
    kernel = functools.partial(_resident_lstm_kernel, blend=blend,
                               num_layers=L, P=P, H=H)
    grid_spec = pltpu.PrefetchScalarGridSpec(
        num_scalar_prefetch=0,
        grid=(1,),
        in_specs=[
            pl.BlockSpec(memory_space=pltpu.MemorySpace.SMEM),           # dt (1,) f32
            pl.BlockSpec((Bp, P), lambda i: (0, 0)),                     # x (bf16, padded)
            pl.BlockSpec((L, Bp, H), lambda i: (0, 0, 0)),               # h_prev stack
            pl.BlockSpec((L, Bp, H), lambda i: (0, 0, 0)),               # c_prev stack
            pl.BlockSpec((L, P + H, 4 * H), lambda i: (0, 0, 0)),        # resident weights
            pl.BlockSpec((L, 1, 4 * H), lambda i: (0, 0, 0)),            # resident bias
        ],
        out_specs=(
            pl.BlockSpec((L, Bp, H), lambda i: (0, 0, 0)),
            pl.BlockSpec((L, Bp, H), lambda i: (0, 0, 0)),
        ),
    )
    return pl.pallas_call(
        kernel,
        out_shape=(jax.ShapeDtypeStruct((L, Bp, H), jnp.float32),
                   jax.ShapeDtypeStruct((L, Bp, H), jnp.float32)),
        grid_spec=grid_spec,
        compiler_params=pltpu.CompilerParams(
            dimension_semantics=("arbitrary",),
            vmem_limit_bytes=_clamp_vmem(_vmem_bytes_resident(L, Bp, P, H))),
    )


@functools.lru_cache(maxsize=None)
def _build_streamed_call(num_layers, batch_pad, pad_in, hidden, blend):
    L, Bp, P, H = num_layers, batch_pad, pad_in, hidden
    kernel = functools.partial(_streamed_lstm_kernel, blend=blend, P=P, H=H)
    grid_spec = pltpu.PrefetchScalarGridSpec(
        num_scalar_prefetch=0,
        grid=(L,),
        in_specs=[
            pl.BlockSpec(memory_space=pltpu.MemorySpace.SMEM),           # dt (1,) f32
            pl.BlockSpec((Bp, P), lambda l: (0, 0)),                     # x, resident
            pl.BlockSpec((1, Bp, H), lambda l: (l, 0, 0)),               # h_prev per layer
            pl.BlockSpec((1, Bp, H), lambda l: (l, 0, 0)),               # c_prev per layer
            pl.BlockSpec((1, P + H, 4 * H), lambda l: (l, 0, 0)),        # streamed weights
            pl.BlockSpec((L, 1, 4 * H), lambda l: (0, 0, 0)),            # resident bias
        ],
        out_specs=(
            pl.BlockSpec((1, Bp, H), lambda l: (l, 0, 0)),
            pl.BlockSpec((1, Bp, H), lambda l: (l, 0, 0)),
        ),
        scratch_shapes=[pltpu.VMEM((Bp, P + H), jnp.bfloat16)],          # [x|h] carry
    )
    # TODO(synk): for very large H where the double-buffered (P+H, 4H) weight
    # tile itself exceeds VMEM, add a hidden-chunk grid axis with per-chunk
    # [i|f|o|g] column regrouping (and int8/fp8 weight quantization if still
    # DMA-bound).
    return pl.pallas_call(
        kernel,
        out_shape=(jax.ShapeDtypeStruct((L, Bp, H), jnp.float32),
                   jax.ShapeDtypeStruct((L, Bp, H), jnp.float32)),
        grid_spec=grid_spec,
        compiler_params=pltpu.CompilerParams(
            dimension_semantics=("arbitrary",),
            vmem_limit_bytes=_clamp_vmem(_vmem_bytes_streamed(L, Bp, P, H))),
    )


# --------------------------------------------------------------------------
# Module wrapper
# --------------------------------------------------------------------------
class LSTMBlockPallas:
    """JAX/Pallas port of the PyTorch LSTMBlock (stack of nn.LSTMCell)."""

    def __init__(self, input_size, hidden_size, num_layers, key,
                 resident_limit_bytes=_RESIDENT_LIMIT_BYTES):
        self.input_size = input_size
        self.hidden_size = hidden_size
        self.num_layers = num_layers
        self.resident_limit_bytes = resident_limit_bytes
        H = hidden_size
        P = max(input_size, hidden_size)      # padded width of the x-slot
        self.pad_in = P

        # Deterministic init mirroring torch.nn.LSTMCell: U(-1/sqrt(H), 1/sqrt(H)).
        bound = 1.0 / math.sqrt(H)
        w_stack, b_stack = [], []
        self.ref_params = []                  # f32 copies for the pure-JAX reference
        for layer in range(num_layers):
            in_sz = input_size if layer == 0 else hidden_size
            key, k1, k2, k3, k4 = jax.random.split(key, 5)
            w_ih = jax.random.uniform(k1, (4 * H, in_sz), jnp.float32, -bound, bound)
            w_hh = jax.random.uniform(k2, (4 * H, H), jnp.float32, -bound, bound)
            b_ih = jax.random.uniform(k3, (4 * H,), jnp.float32, -bound, bound)
            b_hh = jax.random.uniform(k4, (4 * H,), jnp.float32, -bound, bound)
            self.ref_params.append((w_ih, w_hh, b_ih, b_hh))

            # Reorder gate blocks [i,f,g,o] -> [i,f,o,g] so sigmoid is contiguous.
            def perm_rows(m):
                return jnp.concatenate([m[g * H:(g + 1) * H] for g in _GATE_PERM], axis=0)

            w_ih_p, w_hh_p = perm_rows(w_ih), perm_rows(w_hh)
            b_p = perm_rows((b_ih + b_hh).reshape(4 * H, 1)).reshape(1, 4 * H)

            # [W_ih^T padded to P rows ; W_hh^T]  ->  (P+H, 4H)
            w_ih_t = jnp.zeros((P, 4 * H), jnp.float32).at[:in_sz, :].set(w_ih_p.T)
            w_stack.append(jnp.concatenate([w_ih_t, w_hh_p.T], axis=0))
            b_stack.append(b_p)

        self.w = jnp.stack(w_stack).astype(jnp.bfloat16)   # (L, P+H, 4H) bf16
        self.b = jnp.stack(b_stack)                        # (L, 1, 4H)   f32

    def __call__(self, level, tstart, tstop, x, h):
        h_prev, c_prev = h[0], h[1]            # each (num_layers, B, H)
        B = x.shape[0]
        L, H, P = self.num_layers, self.hidden_size, self.pad_in
        Bp = _round_up(B, 16)                  # full bf16 sublanes for the [x|h] tile
        blend = bool(level > 0)                # trace-time constant (2 kernel variants)
        dt = jnp.asarray(tstop - tstart, jnp.float32).reshape(1)   # RUNTIME scalar

        x_pad = jnp.zeros((Bp, P), jnp.bfloat16).at[:B, :self.input_size].set(
            x.astype(jnp.bfloat16))
        if Bp != B:
            hp = jnp.zeros((L, Bp, H), jnp.float32).at[:, :B, :].set(h_prev)
            cp = jnp.zeros((L, Bp, H), jnp.float32).at[:, :B, :].set(c_prev)
        else:
            hp, cp = h_prev, c_prev

        if _vmem_bytes_resident(L, Bp, P, H) <= self.resident_limit_bytes:
            call = _build_resident_call(L, Bp, P, H, blend)
        else:
            call = _build_streamed_call(L, Bp, P, H, blend)

        hn, cn = call(dt, x_pad, hp, cp, self.w, self.b)
        if Bp != B:
            hn, cn = hn[:, :B, :], cn[:, :B, :]
        # TODO(synk): for B >= 32 on v7x, add a leading "parallel" batch grid axis
        # so both TensorCores split the batch.
        return hn, cn


# --------------------------------------------------------------------------
# Pure-JAX reference (exact PyTorch LSTMBlock semantics, f32)
# --------------------------------------------------------------------------
def lstm_block_reference(ref_params, level, tstart, tstop, x, h):
    h_prev, c_prev = h
    dt = tstop - tstart
    x_cur = x
    hn, cn = [], []
    for i, (w_ih, w_hh, b_ih, b_hh) in enumerate(ref_params):
        H = w_hh.shape[1]
        gates = x_cur @ w_ih.T + h_prev[i] @ w_hh.T + b_ih + b_hh
        i_g = jax.nn.sigmoid(gates[:, :H])
        f_g = jax.nn.sigmoid(gates[:, H:2 * H])
        g_g = jnp.tanh(gates[:, 2 * H:3 * H])
        o_g = jax.nn.sigmoid(gates[:, 3 * H:])
        c_new = f_g * c_prev[i] + i_g * g_g
        h_new = o_g * jnp.tanh(c_new)
        hn.append(h_new)
        cn.append(c_new)
        x_cur = h_new                      # un-blended output feeds next layer
    hn = jnp.stack(hn)
    cn = jnp.stack(cn)
    if level > 0:                          # blending applied after the layer loop
        hn = (h_prev + dt * hn) / (1.0 + dt)
        cn = (c_prev + dt * cn) / (1.0 + dt)
    return hn, cn


# --------------------------------------------------------------------------
# Self-test
# --------------------------------------------------------------------------
if __name__ == "__main__":
    input_size = 128
    hidden_size = 128
    num_layers = 3
    batch = 8

    key = jax.random.PRNGKey(0)
    kmod, kx, kh, kc = jax.random.split(key, 4)

    model = LSTMBlockPallas(input_size, hidden_size, num_layers, kmod)
    # Second instance forced onto the streamed fallback path (same weights).
    model_streamed = LSTMBlockPallas(input_size, hidden_size, num_layers, kmod,
                                     resident_limit_bytes=0)

    x = jax.random.normal(kx, (batch, input_size), jnp.float32)
    h0 = jax.random.normal(kh, (num_layers, batch, hidden_size), jnp.float32)
    c0 = jax.random.normal(kc, (num_layers, batch, hidden_size), jnp.float32)

    def check(got, want, tol=0.1):
        assert float(jnp.max(jnp.abs(got - want))) < tol

    # Resident path: blending with two different dt values reuses ONE compiled kernel.
    hn_a, cn_a = model(level=1, tstart=0.0, tstop=0.25, x=x, h=(h0, c0))
    hn_b, cn_b = model(level=1, tstart=0.0, tstop=0.10, x=x, h=(h0, c0))
    hn_0, cn_0 = model(level=0, tstart=0.0, tstop=0.25, x=x, h=(h0, c0))
    jax.block_until_ready((hn_a, cn_a, hn_b, cn_b, hn_0, cn_0))
    assert hn_a.shape == (num_layers, batch, hidden_size)
    assert cn_a.shape == (num_layers, batch, hidden_size)

    ref_a = lstm_block_reference(model.ref_params, 1, 0.0, 0.25, x, (h0, c0))
    ref_b = lstm_block_reference(model.ref_params, 1, 0.0, 0.10, x, (h0, c0))
    ref_0 = lstm_block_reference(model.ref_params, 0, 0.0, 0.25, x, (h0, c0))
    check(hn_a, ref_a[0]); check(cn_a, ref_a[1])
    check(hn_b, ref_b[0]); check(cn_b, ref_b[1])
    check(hn_0, ref_0[0]); check(cn_0, ref_0[1])

    # Streamed fallback path (per-layer grid): blend and no-blend.
    hn_s, cn_s = model_streamed(level=1, tstart=0.0, tstop=0.25, x=x, h=(h0, c0))
    hn_s0, cn_s0 = model_streamed(level=0, tstart=0.0, tstop=0.25, x=x, h=(h0, c0))
    jax.block_until_ready((hn_s, cn_s, hn_s0, cn_s0))
    check(hn_s, ref_a[0]); check(cn_s, ref_a[1])
    check(hn_s0, ref_0[0]); check(cn_s0, ref_0[1])

    print("KERNEL_OK")
</pallas_src>

<mosaic_0001>
module attributes {stable_mosaic.version = 11 : i64} {
  func.func @_resident_lstm_kernel(%arg0: i32, %arg1: memref<1xf32, #tpu.memory_space<smem>>, %arg2: memref<16x128xbf16, #tpu.memory_space<vmem>>, %arg3: memref<3x16x128xf32, #tpu.memory_space<vmem>>, %arg4: memref<3x16x128xf32, #tpu.memory_space<vmem>>, %arg5: memref<3x256x512xbf16, #tpu.memory_space<vmem>>, %arg6: memref<3x1x512xf32, #tpu.memory_space<vmem>>, %arg7: memref<3x16x128xf32, #tpu.memory_space<vmem>>, %arg8: memref<3x16x128xf32, #tpu.memory_space<vmem>>) attributes {dimension_semantics = [#tpu.dimension_semantics<arbitrary>], iteration_bounds = array<i64: 1>, scalar_prefetch = 0 : i64, scratch_operands = 0 : i64, tpu.core_type = #tpu.core_type<tc>, window_params = [{transform_indices = @transform_0, window_bounds = array<i64: 1>}, {pipeline_mode = #tpu.pipeline_mode<synchronous>, transform_indices = @transform_1, window_bounds = array<i64: 16, 128>}, {pipeline_mode = #tpu.pipeline_mode<synchronous>, transform_indices = @transform_2, window_bounds = array<i64: 3, 16, 128>}, {pipeline_mode = #tpu.pipeline_mode<synchronous>, transform_indices = @transform_3, window_bounds = array<i64: 3, 16, 128>}, {pipeline_mode = #tpu.pipeline_mode<synchronous>, transform_indices = @transform_4, window_bounds = array<i64: 3, 256, 512>}, {pipeline_mode = #tpu.pipeline_mode<synchronous>, transform_indices = @transform_5, window_bounds = array<i64: 3, 1, 512>}, {pipeline_mode = #tpu.pipeline_mode<synchronous>, transform_indices = @transform_6, window_bounds = array<i64: 3, 16, 128>}, {pipeline_mode = #tpu.pipeline_mode<synchronous>, transform_indices = @transform_7, window_bounds = array<i64: 3, 16, 128>}]} {
    %c0 = arith.constant 0 : index
    %c0_0 = arith.constant 0 : index
    %0 = vector.load %arg2[%c0, %c0_0] : memref<16x128xbf16, #tpu.memory_space<vmem>>, vector<16x128xbf16>
    %c0_1 = arith.constant 0 : index
    %c0_2 = arith.constant 0 : index
    %c0_3 = arith.constant 0 : index
    %1 = vector.load %arg3[%c0_1, %c0_2, %c0_3] : memref<3x16x128xf32, #tpu.memory_space<vmem>>, vector<1x16x128xf32>
    %2 = vector.shape_cast %1 : vector<1x16x128xf32> to vector<16x128xf32>
    %c0_4 = arith.constant 0 : index
    %c0_5 = arith.constant 0 : index
    %c0_6 = arith.constant 0 : index
    %3 = vector.load %arg4[%c0_4, %c0_5, %c0_6] : memref<3x16x128xf32, #tpu.memory_space<vmem>>, vector<1x16x128xf32>
    %4 = vector.shape_cast %3 : vector<1x16x128xf32> to vector<16x128xf32>
    %5 = arith.truncf %2 : vector<16x128xf32> to vector<16x128xbf16>
    %6 = tpu.concatenate %0, %5 in 1 : vector<16x128xbf16>, vector<16x128xbf16> -> vector<16x256xbf16>
    %c0_7 = arith.constant 0 : index
    %c0_8 = arith.constant 0 : index
    %c0_9 = arith.constant 0 : index
    %7 = vector.load %arg5[%c0_7, %c0_8, %c0_9] : memref<3x256x512xbf16, #tpu.memory_space<vmem>>, vector<1x256x512xbf16>
    %8 = vector.shape_cast %7 : vector<1x256x512xbf16> to vector<256x512xbf16>
    %cst = arith.constant dense<0.000000e+00> : vector<16x512xf32>
    %9 = tpu.matmul %6, %8, %cst {dimension_numbers = #tpu.dot_dimension_numbers<[1], [0], [0], [1], [0, 0, 1, 1], [], []>} : vector<16x256xbf16>, vector<256x512xbf16>, vector<16x512xf32> -> vector<16x512xf32>
    %c0_10 = arith.constant 0 : index
    %c0_11 = arith.constant 0 : index
    %c0_12 = arith.constant 0 : index
    %10 = vector.load %arg6[%c0_10, %c0_11, %c0_12] : memref<3x1x512xf32, #tpu.memory_space<vmem>>, vector<1x1x512xf32>
    %11 = vector.shape_cast %10 : vector<1x1x512xf32> to vector<1x512xf32>
    %12 = vector.broadcast %11 : vector<1x512xf32> to vector<16x512xf32>
    %13 = arith.addf %9, %12 : vector<16x512xf32>
    %14 = vector.extract_strided_slice %13 {offsets = [0, 0], sizes = [16, 384], strides = [1, 1]} : vector<16x512xf32> to vector<16x384xf32>
    %15 = arith.negf %14 : vector<16x384xf32>
    %16 = math.exp %15 : vector<16x384xf32>
    %cst_13 = arith.constant 1.000000e+00 : f32
    %17 = vector.broadcast %cst_13 : f32 to vector<16x384xf32>
    %18 = arith.addf %17, %16 : vector<16x384xf32>
    %19 = arith.divf %17, %18 : vector<16x384xf32>
    %20 = vector.extract_strided_slice %19 {offsets = [0, 0], sizes = [16, 128], strides = [1, 1]} : vector<16x384xf32> to vector<16x128xf32>
    %21 = vector.extract_strided_slice %19 {offsets = [0, 128], sizes = [16, 128], strides = [1, 1]} : vector<16x384xf32> to vector<16x128xf32>
    %22 = vector.extract_strided_slice %19 {offsets = [0, 256], sizes = [16, 128], strides = [1, 1]} : vector<16x384xf32> to vector<16x128xf32>
    %23 = vector.extract_strided_slice %13 {offsets = [0, 384], sizes = [16, 128], strides = [1, 1]} : vector<16x512xf32> to vector<16x128xf32>
    %24 = math.tanh %23 : vector<16x128xf32>
    %25 = arith.mulf %21, %4 : vector<16x128xf32>
    %26 = arith.mulf %20, %24 : vector<16x128xf32>
    %27 = arith.addf %25, %26 : vector<16x128xf32>
    %28 = math.tanh %27 : vector<16x128xf32>
    %29 = arith.mulf %22, %28 : vector<16x128xf32>
    %c0_14 = arith.constant 0 : index
    %30 = memref.load %arg1[%c0_14] : memref<1xf32, #tpu.memory_space<smem>>
    %cst_15 = arith.constant 1.000000e+00 : f32
    %31 = arith.addf %cst_15, %30 : f32
    %cst_16 = arith.constant 1.000000e+00 : f32
    %32 = arith.divf %cst_16, %31 : f32
    %33 = vector.broadcast %30 : f32 to vector<16x128xf32>
    %34 = arith.mulf %33, %29 : vector<16x128xf32>
    %35 = arith.addf %2, %34 : vector<16x128xf32>
    %36 = vector.broadcast %32 : f32 to vector<16x128xf32>
    %37 = arith.mulf %35, %36 : vector<16x128xf32>
    %c0_17 = arith.constant 0 : index
    %c0_18 = arith.constant 0 : index
    %c0_19 = arith.constant 0 : index
    %38 = vector.load %arg7[%c0_17, %c0_18, %c0_19] : memref<3x16x128xf32, #tpu.memory_space<vmem>>, vector<1x16x128xf32>
    %39 = vector.shape_cast %38 : vector<1x16x128xf32> to vector<16x128xf32>
    %40 = vector.shape_cast %37 : vector<16x128xf32> to vector<1x16x128xf32>
    tpu.vector_store %arg7[%c0_17, %c0_18, %c0_19], %40 {strides = array<i32>} : memref<3x16x128xf32, #tpu.memory_space<vmem>>, vector<1x16x128xf32>,
    %41 = vector.broadcast %30 : f32 to vector<16x128xf32>
    %42 = arith.mulf %41, %27 : vector<16x128xf32>
    %43 = arith.addf %4, %42 : vector<16x128xf32>
    %44 = vector.broadcast %32 : f32 to vector<16x128xf32>
    %45 = arith.mulf %43, %44 : vector<16x128xf32>
    %c0_20 = arith.constant 0 : index
    %c0_21 = arith.constant 0 : index
    %c0_22 = arith.constant 0 : index
    %46 = vector.load %arg8[%c0_20, %c0_21, %c0_22] : memref<3x16x128xf32, #tpu.memory_space<vmem>>, vector<1x16x128xf32>
    %47 = vector.shape_cast %46 : vector<1x16x128xf32> to vector<16x128xf32>
    %48 = vector.shape_cast %45 : vector<16x128xf32> to vector<1x16x128xf32>
    tpu.vector_store %arg8[%c0_20, %c0_21, %c0_22], %48 {strides = array<i32>} : memref<3x16x128xf32, #tpu.memory_space<vmem>>, vector<1x16x128xf32>,
    %49 = arith.truncf %29 : vector<16x128xf32> to vector<16x128xbf16>
    %c1 = arith.constant 1 : index
    %c0_23 = arith.constant 0 : index
    %c0_24 = arith.constant 0 : index
    %50 = vector.load %arg3[%c1, %c0_23, %c0_24] : memref<3x16x128xf32, #tpu.memory_space<vmem>>, vector<1x16x128xf32>
    %51 = vector.shape_cast %50 : vector<1x16x128xf32> to vector<16x128xf32>
    %c1_25 = arith.constant 1 : index
    %c0_26 = arith.constant 0 : index
    %c0_27 = arith.constant 0 : index
    %52 = vector.load %arg4[%c1_25, %c0_26, %c0_27] : memref<3x16x128xf32, #tpu.memory_space<vmem>>, vector<1x16x128xf32>
    %53 = vector.shape_cast %52 : vector<1x16x128xf32> to vector<16x128xf32>
    %54 = arith.truncf %51 : vector<16x128xf32> to vector<16x128xbf16>
    %55 = tpu.concatenate %49, %54 in 1 : vector<16x128xbf16>, vector<16x128xbf16> -> vector<16x256xbf16>
    %c1_28 = arith.constant 1 : index
    %c0_29 = arith.constant 0 : index
    %c0_30 = arith.constant 0 : index
    %56 = vector.load %arg5[%c1_28, %c0_29, %c0_30] : memref<3x256x512xbf16, #tpu.memory_space<vmem>>, vector<1x256x512xbf16>
    %57 = vector.shape_cast %56 : vector<1x256x512xbf16> to vector<256x512xbf16>
    %cst_31 = arith.constant dense<0.000000e+00> : vector<16x512xf32>
    %58 = tpu.matmul %55, %57, %cst_31 {dimension_numbers = #tpu.dot_dimension_numbers<[1], [0], [0], [1], [0, 0, 1, 1], [], []>} : vector<16x256xbf16>, vector<256x512xbf16>, vector<16x512xf32> -> vector<16x512xf32>
    %c1_32 = arith.constant 1 : index
    %c0_33 = arith.constant 0 : index
    %c0_34 = arith.constant 0 : index
    %59 = vector.load %arg6[%c1_32, %c0_33, %c0_34] : memref<3x1x512xf32, #tpu.memory_space<vmem>>, vector<1x1x512xf32>
    %60 = vector.shape_cast %59 : vector<1x1x512xf32> to vector<1x512xf32>
    %61 = vector.broadcast %60 : vector<1x512xf32> to vector<16x512xf32>
    %62 = arith.addf %58, %61 : vector<16x512xf32>
    %63 = vector.extract_strided_slice %62 {offsets = [0, 0], sizes = [16, 384], strides = [1, 1]} : vector<16x512xf32> to vector<16x384xf32>
    %64 = arith.negf %63 : vector<16x384xf32>
    %65 = math.exp %64 : vector<16x384xf32>
    %cst_35 = arith.constant 1.000000e+00 : f32
    %66 = vector.broadcast %cst_35 : f32 to vector<16x384xf32>
    %67 = arith.addf %66, %65 : vector<16x384xf32>
    %68 = arith.divf %66, %67 : vector<16x384xf32>
    %69 = vector.extract_strided_slice %68 {offsets = [0, 0], sizes = [16, 128], strides = [1, 1]} : vector<16x384xf32> to vector<16x128xf32>
    %70 = vector.extract_strided_slice %68 {offsets = [0, 128], sizes = [16, 128], strides = [1, 1]} : vector<16x384xf32> to vector<16x128xf32>
    %71 = vector.extract_strided_slice %68 {offsets = [0, 256], sizes = [16, 128], strides = [1, 1]} : vector<16x384xf32> to vector<16x128xf32>
    %72 = vector.extract_strided_slice %62 {offsets = [0, 384], sizes = [16, 128], strides = [1, 1]} : vector<16x512xf32> to vector<16x128xf32>
    %73 = math.tanh %72 : vector<16x128xf32>
    %74 = arith.mulf %70, %53 : vector<16x128xf32>
    %75 = arith.mulf %69, %73 : vector<16x128xf32>
    %76 = arith.addf %74, %75 : vector<16x128xf32>
    %77 = math.tanh %76 : vector<16x128xf32>
    %78 = arith.mulf %71, %77 : vector<16x128xf32>
    %c0_36 = arith.constant 0 : index
    %79 = memref.load %arg1[%c0_36] : memref<1xf32, #tpu.memory_space<smem>>
    %cst_37 = arith.constant 1.000000e+00 : f32
    %80 = arith.addf %cst_37, %79 : f32
    %cst_38 = arith.constant 1.000000e+00 : f32
    %81 = arith.divf %cst_38, %80 : f32
    %82 = vector.broadcast %79 : f32 to vector<16x128xf32>
    %83 = arith.mulf %82, %78 : vector<16x128xf32>
    %84 = arith.addf %51, %83 : vector<16x128xf32>
    %85 = vector.broadcast %81 : f32 to vector<16x128xf32>
    %86 = arith.mulf %84, %85 : vector<16x128xf32>
    %c1_39 = arith.constant 1 : index
    %c0_40 = arith.constant 0 : index
    %c0_41 = arith.constant 0 : index
    %87 = vector.load %arg7[%c1_39, %c0_40, %c0_41] : memref<3x16x128xf32, #tpu.memory_space<vmem>>, vector<1x16x128xf32>
    %88 = vector.shape_cast %87 : vector<1x16x128xf32> to vector<16x128xf32>
    %89 = vector.shape_cast %86 : vector<16x128xf32> to vector<1x16x128xf32>
    tpu.vector_store %arg7[%c1_39, %c0_40, %c0_41], %89 {strides = array<i32>} : memref<3x16x128xf32, #tpu.memory_space<vmem>>, vector<1x16x128xf32>,
    %90 = vector.broadcast %79 : f32 to vector<16x128xf32>
    %91 = arith.mulf %90, %76 : vector<16x128xf32>
    %92 = arith.addf %53, %91 : vector<16x128xf32>
    %93 = vector.broadcast %81 : f32 to vector<16x128xf32>
    %94 = arith.mulf %92, %93 : vector<16x128xf32>
    %c1_42 = arith.constant 1 : index
    %c0_43 = arith.constant 0 : index
    %c0_44 = arith.constant 0 : index
    %95 = vector.load %arg8[%c1_42, %c0_43, %c0_44] : memref<3x16x128xf32, #tpu.memory_space<vmem>>, vector<1x16x128xf32>
    %96 = vector.shape_cast %95 : vector<1x16x128xf32> to vector<16x128xf32>
    %97 = vector.shape_cast %94 : vector<16x128xf32> to vector<1x16x128xf32>
    tpu.vector_store %arg8[%c1_42, %c0_43, %c0_44], %97 {strides = array<i32>} : memref<3x16x128xf32, #tpu.memory_space<vmem>>, vector<1x16x128xf32>,
    %98 = arith.truncf %78 : vector<16x128xf32> to vector<16x128xbf16>
    %c2 = arith.constant 2 : index
    %c0_45 = arith.constant 0 : index
    %c0_46 = arith.constant 0 : index
    %99 = vector.load %arg3[%c2, %c0_45, %c0_46] : memref<3x16x128xf32, #tpu.memory_space<vmem>>, vector<1x16x128xf32>
    %100 = vector.shape_cast %99 : vector<1x16x128xf32> to vector<16x128xf32>
    %c2_47 = arith.constant 2 : index
    %c0_48 = arith.constant 0 : index
    %c0_49 = arith.constant 0 : index
    %101 = vector.load %arg4[%c2_47, %c0_48, %c0_49] : memref<3x16x128xf32, #tpu.memory_space<vmem>>, vector<1x16x128xf32>
    %102 = vector.shape_cast %101 : vector<1x16x128xf32> to vector<16x128xf32>
    %103 = arith.truncf %100 : vector<16x128xf32> to vector<16x128xbf16>
    %104 = tpu.concatenate %98, %103 in 1 : vector<16x128xbf16>, vector<16x128xbf16> -> vector<16x256xbf16>
    %c2_50 = arith.constant 2 : index
    %c0_51 = arith.constant 0 : index
    %c0_52 = arith.constant 0 : index
    %105 = vector.load %arg5[%c2_50, %c0_51, %c0_52] : memref<3x256x512xbf16, #tpu.memory_space<vmem>>, vector<1x256x512xbf16>
    %106 = vector.shape_cast %105 : vector<1x256x512xbf16> to vector<256x512xbf16>
    %cst_53 = arith.constant dense<0.000000e+00> : vector<16x512xf32>
    %107 = tpu.matmul %104, %106, %cst_53 {dimension_numbers = #tpu.dot_dimension_numbers<[1], [0], [0], [1], [0, 0, 1, 1], [], []>} : vector<16x256xbf16>, vector<256x512xbf16>, vector<16x512xf32> -> vector<16x512xf32>
    %c2_54 = arith.constant 2 : index
    %c0_55 = arith.constant 0 : index
    %c0_56 = arith.constant 0 : index
    %108 = vector.load %arg6[%c2_54, %c0_55, %c0_56] : memref<3x1x512xf32, #tpu.memory_space<vmem>>, vector<1x1x512xf32>
    %109 = vector.shape_cast %108 : vector<1x1x512xf32> to vector<1x512xf32>
    %110 = vector.broadcast %109 : vector<1x512xf32> to vector<16x512xf32>
    %111 = arith.addf %107, %110 : vector<16x512xf32>
    %112 = vector.extract_strided_slice %111 {offsets = [0, 0], sizes = [16, 384], strides = [1, 1]} : vector<16x512xf32> to vector<16x384xf32>
    %113 = arith.negf %112 : vector<16x384xf32>
    %114 = math.exp %113 : vector<16x384xf32>
    %cst_57 = arith.constant 1.000000e+00 : f32
    %115 = vector.broadcast %cst_57 : f32 to vector<16x384xf32>
    %116 = arith.addf %115, %114 : vector<16x384xf32>
    %117 = arith.divf %115, %116 : vector<16x384xf32>
    %118 = vector.extract_strided_slice %117 {offsets = [0, 0], sizes = [16, 128], strides = [1, 1]} : vector<16x384xf32> to vector<16x128xf32>
    %119 = vector.extract_strided_slice %117 {offsets = [0, 128], sizes = [16, 128], strides = [1, 1]} : vector<16x384xf32> to vector<16x128xf32>
    %120 = vector.extract_strided_slice %117 {offsets = [0, 256], sizes = [16, 128], strides = [1, 1]} : vector<16x384xf32> to vector<16x128xf32>
    %121 = vector.extract_strided_slice %111 {offsets = [0, 384], sizes = [16, 128], strides = [1, 1]} : vector<16x512xf32> to vector<16x128xf32>
    %122 = math.tanh %121 : vector<16x128xf32>
    %123 = arith.mulf %119, %102 : vector<16x128xf32>
    %124 = arith.mulf %118, %122 : vector<16x128xf32>
    %125 = arith.addf %123, %124 : vector<16x128xf32>
    %126 = math.tanh %125 : vector<16x128xf32>
    %127 = arith.mulf %120, %126 : vector<16x128xf32>
    %c0_58 = arith.constant 0 : index
    %128 = memref.load %arg1[%c0_58] : memref<1xf32, #tpu.memory_space<smem>>
    %cst_59 = arith.constant 1.000000e+00 : f32
    %129 = arith.addf %cst_59, %128 : f32
    %cst_60 = arith.constant 1.000000e+00 : f32
    %130 = arith.divf %cst_60, %129 : f32
    %131 = vector.broadcast %128 : f32 to vector<16x128xf32>
    %132 = arith.mulf %131, %127 : vector<16x128xf32>
    %133 = arith.addf %100, %132 : vector<16x128xf32>
    %134 = vector.broadcast %130 : f32 to vector<16x128xf32>
    %135 = arith.mulf %133, %134 : vector<16x128xf32>
    %c2_61 = arith.constant 2 : index
    %c0_62 = arith.constant 0 : index
    %c0_63 = arith.constant 0 : index
    %136 = vector.load %arg7[%c2_61, %c0_62, %c0_63] : memref<3x16x128xf32, #tpu.memory_space<vmem>>, vector<1x16x128xf32>
    %137 = vector.shape_cast %136 : vector<1x16x128xf32> to vector<16x128xf32>
    %138 = vector.shape_cast %135 : vector<16x128xf32> to vector<1x16x128xf32>
    tpu.vector_store %arg7[%c2_61, %c0_62, %c0_63], %138 {strides = array<i32>} : memref<3x16x128xf32, #tpu.memory_space<vmem>>, vector<1x16x128xf32>,
    %139 = vector.broadcast %128 : f32 to vector<16x128xf32>
    %140 = arith.mulf %139, %125 : vector<16x128xf32>
    %141 = arith.addf %102, %140 : vector<16x128xf32>
    %142 = vector.broadcast %130 : f32 to vector<16x128xf32>
    %143 = arith.mulf %141, %142 : vector<16x128xf32>
    %c2_64 = arith.constant 2 : index
    %c0_65 = arith.constant 0 : index
    %c0_66 = arith.constant 0 : index
    %144 = vector.load %arg8[%c2_64, %c0_65, %c0_66] : memref<3x16x128xf32, #tpu.memory_space<vmem>>, vector<1x16x128xf32>
    %145 = vector.shape_cast %144 : vector<1x16x128xf32> to vector<16x128xf32>
    %146 = vector.shape_cast %143 : vector<16x128xf32> to vector<1x16x128xf32>
    tpu.vector_store %arg8[%c2_64, %c0_65, %c0_66], %146 {strides = array<i32>} : memref<3x16x128xf32, #tpu.memory_space<vmem>>, vector<1x16x128xf32>,
    return
  }
  func.func @transform_0(%arg0: i32) -> i32 {
    %c0_i32 = arith.constant 0 : i32
    %c0_i32_0 = arith.constant 0 : i32
    return %c0_i32 : i32
  }
  func.func @transform_1(%arg0: i32) -> (i32, i32) {
    %c0_i32 = arith.constant 0 : i32
    %c0_i32_0 = arith.constant 0 : i32
    %c0_i32_1 = arith.constant 0 : i32
    return %c0_i32, %c0_i32_0 : i32, i32
  }
  func.func @transform_2(%arg0: i32) -> (i32, i32, i32) {
    %c0_i32 = arith.constant 0 : i32
    %c0_i32_0 = arith.constant 0 : i32
    %c0_i32_1 = arith.constant 0 : i32
    %c0_i32_2 = arith.constant 0 : i32
    return %c0_i32, %c0_i32_0, %c0_i32_1 : i32, i32, i32
  }
  func.func @transform_3(%arg0: i32) -> (i32, i32, i32) {
    %c0_i32 = arith.constant 0 : i32
    %c0_i32_0 = arith.constant 0 : i32
    %c0_i32_1 = arith.constant 0 : i32
    %c0_i32_2 = arith.constant 0 : i32
    return %c0_i32, %c0_i32_0, %c0_i32_1 : i32, i32, i32
  }
  func.func @transform_4(%arg0: i32) -> (i32, i32, i32) {
    %c0_i32 = arith.constant 0 : i32
    %c0_i32_0 = arith.constant 0 : i32
    %c0_i32_1 = arith.constant 0 : i32
    %c0_i32_2 = arith.constant 0 : i32
    return %c0_i32, %c0_i32_0, %c0_i32_1 : i32, i32, i32
  }
  func.func @transform_5(%arg0: i32) -> (i32, i32, i32) {
    %c0_i32 = arith.constant 0 : i32
    %c0_i32_0 = arith.constant 0 : i32
    %c0_i32_1 = arith.constant 0 : i32
    %c0_i32_2 = arith.constant 0 : i32
    return %c0_i32, %c0_i32_0, %c0_i32_1 : i32, i32, i32
  }
  func.func @transform_6(%arg0: i32) -> (i32, i32, i32) {
    %c0_i32 = arith.constant 0 : i32
    %c0_i32_0 = arith.constant 0 : i32
    %c0_i32_1 = arith.constant 0 : i32
    %c0_i32_2 = arith.constant 0 : i32
    return %c0_i32, %c0_i32_0, %c0_i32_1 : i32, i32, i32
  }
  func.func @transform_7(%arg0: i32) -> (i32, i32, i32) {
    %c0_i32 = arith.constant 0 : i32
    %c0_i32_0 = arith.constant 0 : i32
    %c0_i32_1 = arith.constant 0 : i32
    %c0_i32_2 = arith.constant 0 : i32
    return %c0_i32, %c0_i32_0, %c0_i32_1 : i32, i32, i32
  }
}

</mosaic_0001>

<llo_original>
// kernel: tpu_custom_call.1
$region0: #{tpu_custom_call.1}
  #allocation0 [shape = 'u32[]', space=smem, size = 0x4, offset = 0x4, fixed_abs, tag = 'smem constant byte address 0x4 - core index']
  #allocation1 [shape = 'u32[72,128]{1,0:T(1,128)}', space=vmem, size = 0x9000, scoped, tag = 'internal scratch']
  #allocation2 [shape = 'f32[1]{0:T(128)S(6)}', space=smem, size = 0x200, scoped, tag = 'scoped memory for tpu_custom_call.1']
  %s0 = inlined_call_operand.<no memory space> [shape: f32[1], index: 0, kind: input, shape index: {}]
  %s1 = inlined_call_operand.hbm [shape: bf16[16,128], index: 1, kind: input, shape index: {}]
  %s2 = inlined_call_operand.hbm [shape: f32[3,16,128], index: 2, kind: input, shape index: {}]
  %s3 = inlined_call_operand.hbm [shape: f32[3,16,128], index: 3, kind: input, shape index: {}]
  %s4 = inlined_call_operand.hbm [shape: bf16[3,256,512], index: 4, kind: input, shape index: {}]
  %s5 = inlined_call_operand.hbm [shape: f32[3,1,512], index: 5, kind: input, shape index: {}]
  %s6 = inlined_call_operand.hbm [shape: f32[3,16,128], index: 6, kind: output, shape index: {0}]
  %s7 = inlined_call_operand.hbm [shape: f32[3,16,128], index: 7, kind: output, shape index: {1}]
  %8 = xla_tuple %s6, %s7
  %s9 = sld [smem:[#allocation0]]
  $region62: #{tpu_custom_call.1} parent=0
    _
  %s11 = ssub.s32 1, %s9
  %s12 = scalar_select 0, %s11, %s9
  %13 = sst [smem:[#allocation2]] %s0
  $region1: #{tpu_custom_call.1} parent=0
    #allocation3 [shape = 'u8[4096]{0}', space=vmem, size = 0x1000, scoped, tag = 'input window, operand 1, single buffered']
    #allocation4 [shape = 's32[1]{0}', space=sflag, size = 0x4, scoped, tag = 'scoped memory for tpu_custom_call.1']
    #allocation5 [shape = 's32[1]{0}', space=sflag, size = 0x4, scoped, tag = 'scoped memory for tpu_custom_call.1']
    #allocation6 [shape = 'u8[24576]{0}', space=vmem, size = 0x6000, scoped, tag = 'input window, operand 2, single buffered']
    #allocation7 [shape = 's32[1]{0}', space=sflag, size = 0x4, scoped, tag = 'scoped memory for tpu_custom_call.1']
    #allocation8 [shape = 'u8[24576]{0}', space=vmem, size = 0x6000, scoped, tag = 'input window, operand 3, single buffered']
    #allocation9 [shape = 'u8[786432]{0}', space=vmem, size = 0xc0000, scoped, tag = 'input window, operand 4, single buffered']
    #allocation10 [shape = 's32[1]{0}', space=sflag, size = 0x4, scoped, tag = 'scoped memory for tpu_custom_call.1']
    #allocation11 [shape = 'u8[6144]{0}', space=vmem, size = 0x1800, scoped, tag = 'input window, operand 5, single buffered']
    #allocation12 [shape = 'u8[24576]{0}', space=vmem, size = 0x6000, scoped, tag = 'output window, operand 0, single buffered']
    #allocation13 [shape = 'u8[24576]{0}', space=vmem, size = 0x6000, scoped, tag = 'output window, operand 1, single buffered']
    #allocation14 [shape = 's32[1]{0}', space=sflag, size = 0x4, scoped, tag = 'scoped memory for tpu_custom_call.1']
    %14 = vsyncpa [#allocation4], 0
    %15 = vsyncpa [#allocation7], 0
    %16 = vsyncpa [#allocation10], 0
    %17 = vsyncpa [#allocation5], 0
    %18 = vsyncpa [#allocation14], 0
    // Predicated region
    $region2: #{tpu_custom_call.1} parent=1 // pred_check
      _
    $region3: #{tpu_custom_call.1} parent=1 // pred_check_branch
      %20 = sbr.rel (0) target = $region5
    $region4: #{tpu_custom_call.1} parent=1 // pred_region
      _
    $region5: #{tpu_custom_call.1} parent=1 // pred_fallthru
      _
    // Predicated region
    $region6: #{tpu_custom_call.1} parent=1 // pred_check
      _
    $region7: #{tpu_custom_call.1} parent=1 // pred_check_branch
      %22 = sbr.rel (0) target = $region9
    $region8: #{tpu_custom_call.1} parent=1 // pred_region
      %24 = vsyncadd [#allocation4], 0
      %s25 = sshll.u32 %s1, 4
      %s26 = int_to_ptr.hbm [resolvable:$true] %s25
      %s27 = sshll.u32 [#allocation3], 4
      %s28 = int_to_ptr.vmem [resolvable:$true] %s27
      %33 = dma.hbm_to_vmem [thread:$0]  %s26, 128, %s28, [#allocation4], 64, 64, 4
    $region9: #{tpu_custom_call.1} parent=1 // pred_fallthru
      _
    // Predicated region
    $region10: #{tpu_custom_call.1} parent=1 // pred_check
      _
    $region11: #{tpu_custom_call.1} parent=1 // pred_check_branch
      %35 = sbr.rel (0) target = $region13
    $region12: #{tpu_custom_call.1} parent=1 // pred_region
      %37 = vsyncadd [#allocation7], 0
      %s38 = sshll.u32 %s2, 4
      %s39 = int_to_ptr.hbm [resolvable:$true] %s38
      %s40 = sshll.u32 [#allocation6], 4
      %s41 = int_to_ptr.vmem [resolvable:$true] %s40
      %46 = dma.hbm_to_vmem [thread:$0]  %s39, 768, %s41, [#allocation7], 128, 128, 8
    $region13: #{tpu_custom_call.1} parent=1 // pred_fallthru
      _
    // Predicated region
    $region14: #{tpu_custom_call.1} parent=1 // pred_check
      _
    $region15: #{tpu_custom_call.1} parent=1 // pred_check_branch
      %48 = sbr.rel (0) target = $region17
    $region16: #{tpu_custom_call.1} parent=1 // pred_region
      %50 = vsyncadd [#allocation7], 0
      %s51 = sshll.u32 %s3, 4
      %s52 = int_to_ptr.hbm [resolvable:$true] %s51
      %s53 = sshll.u32 [#allocation8], 4
      %s54 = int_to_ptr.vmem [resolvable:$true] %s53
      %59 = dma.hbm_to_vmem [thread:$0]  %s52, 768, %s54, [#allocation7], 128, 128, 8
    $region17: #{tpu_custom_call.1} parent=1 // pred_fallthru
      _
    // Predicated region
    $region18: #{tpu_custom_call.1} parent=1 // pred_check
      _
    $region19: #{tpu_custom_call.1} parent=1 // pred_check_branch
      %61 = sbr.rel (0) target = $region21
    $region20: #{tpu_custom_call.1} parent=1 // pred_region
      %63 = vsyncadd [#allocation10], 0
      %s64 = sshll.u32 %s4, 4
      %s65 = int_to_ptr.hbm [resolvable:$true] %s64
      %s66 = sshll.u32 [#allocation9], 4
      %s67 = int_to_ptr.vmem [resolvable:$true] %s66
      %72 = dma.hbm_to_vmem [thread:$0]  %s65, 24576, %s67, [#allocation10], 256, 256, 16
    $region21: #{tpu_custom_call.1} parent=1 // pred_fallthru
      _
    // Predicated region
    $region22: #{tpu_custom_call.1} parent=1 // pred_check
      _
    $region23: #{tpu_custom_call.1} parent=1 // pred_check_branch
      %74 = sbr.rel (0) target = $region25
    $region24: #{tpu_custom_call.1} parent=1 // pred_region
      %76 = vsyncadd [#allocation10], 0
      %s77 = sshll.u32 %s5, 4
      %s78 = int_to_ptr.hbm [resolvable:$true] %s77
      %s79 = sshll.u32 [#allocation11], 4
      %s80 = int_to_ptr.vmem [resolvable:$true] %s79
      %85 = dma.hbm_to_vmem [thread:$0]  %s78, 192, %s80, [#allocation10], 64, 64, 4
    $region25: #{tpu_custom_call.1} parent=1 // pred_fallthru
      _
    // Predicated region
    $region26: #{tpu_custom_call.1} parent=1 // pred_check
      _
    $region27: #{tpu_custom_call.1} parent=1 // pred_check_branch
      %87 = sbr.rel (0) target = $region29
    $region28: #{tpu_custom_call.1} parent=1 // pred_region
      %89 = dma.done [#allocation4], 128
    $region29: #{tpu_custom_call.1} parent=1 // pred_fallthru
      _
    // Predicated region
    $region30: #{tpu_custom_call.1} parent=1 // pred_check
      _
    $region31: #{tpu_custom_call.1} parent=1 // pred_check_branch
      %91 = sbr.rel (0) target = $region33
    $region32: #{tpu_custom_call.1} parent=1 // pred_region
      %93 = dma.done [#allocation7], 768
    $region33: #{tpu_custom_call.1} parent=1 // pred_fallthru
      _
    // Predicated region
    $region34: #{tpu_custom_call.1} parent=1 // pred_check
      _
    $region35: #{tpu_custom_call.1} parent=1 // pred_check_branch
      %95 = sbr.rel (0) target = $region37
    $region36: #{tpu_custom_call.1} parent=1 // pred_region
      %97 = dma.done [#allocation7], 768
    $region37: #{tpu_custom_call.1} parent=1 // pred_fallthru
      _
    // Predicated region
    $region38: #{tpu_custom_call.1} parent=1 // pred_check
      _
    $region39: #{tpu_custom_call.1} parent=1 // pred_check_branch
      %99 = sbr.rel (0) target = $region41
    $region40: #{tpu_custom_call.1} parent=1 // pred_region
      %101 = dma.done [#allocation10], 24576
    $region41: #{tpu_custom_call.1} parent=1 // pred_fallthru
      _
    // Predicated region
    $region42: #{tpu_custom_call.1} parent=1 // pred_check
      _
    $region43: #{tpu_custom_call.1} parent=1 // pred_check_branch
      %103 = sbr.rel (0) target = $region45
    $region44: #{tpu_custom_call.1} parent=1 // pred_region
      %105 = dma.done [#allocation10], 192
    $region45: #{tpu_custom_call.1} parent=1 // pred_fallthru
      _
    %v106 = vld [vmem:[#allocation3] sm:$0xf]
    %v107 = vld [vmem:[#allocation3 + $0x4] sm:$0xf]
    %v108 = vld [vmem:[#allocation6] sm:$0xff]
    %v109 = vld [vmem:[#allocation6 + $0x8] sm:$0xff]
    %v110 = vld [vmem:[#allocation8] sm:$0xff]
    %v111 = vld [vmem:[#allocation8 + $0x8] sm:$0xff]
    %v112 = vpack.c.bf16 %v108, %v108
    %v113 = vpack.c.bf16 %v109, %v109
    %v116 = vunpack.c.l.b16 %v106
    %v117 = vunpack.c.l.b16 %v107
    %v118 = vpack.c.b16 %v117, %v116
    %v122 = vunpack.c.l.b16 %v112
    %v123 = vunpack.c.l.b16 %v113
    %v124 = vpack.c.b16 %v123, %v122
    %v126 = vld [vmem:[#allocation9] sm:$0xff]
    %v127 = vld [vmem:[#allocation9 + $0x8] sm:$0xff]
    %v128 = vld [vmem:[#allocation9 + $0x10] sm:$0xff]
    %v129 = vld [vmem:[#allocation9 + $0x18] sm:$0xff]
    %v130 = vld [vmem:[#allocation9 + $0x20] sm:$0xff]
    %v131 = vld [vmem:[#allocation9 + $0x28] sm:$0xff]
    %v132 = vld [vmem:[#allocation9 + $0x30] sm:$0xff]
    %v133 = vld [vmem:[#allocation9 + $0x38] sm:$0xff]
    %v134 = vld [vmem:[#allocation9 + $0x40] sm:$0xff]
    %v135 = vld [vmem:[#allocation9 + $0x48] sm:$0xff]
    %v136 = vld [vmem:[#allocation9 + $0x50] sm:$0xff]
    %v137 = vld [vmem:[#allocation9 + $0x58] sm:$0xff]
    %v138 = vld [vmem:[#allocation9 + $0x60] sm:$0xff]
    %v139 = vld [vmem:[#allocation9 + $0x68] sm:$0xff]
    %v140 = vld [vmem:[#allocation9 + $0x70] sm:$0xff]
    %v141 = vld [vmem:[#allocation9 + $0x78] sm:$0xff]
    %v142 = vld [vmem:[#allocation9 + $0x80] sm:$0xff]
    %v143 = vld [vmem:[#allocation9 + $0x88] sm:$0xff]
    %v144 = vld [vmem:[#allocation9 + $0x90] sm:$0xff]
    %v145 = vld [vmem:[#allocation9 + $0x98] sm:$0xff]
    %v146 = vld [vmem:[#allocation9 + $0xa0] sm:$0xff]
    %v147 = vld [vmem:[#allocation9 + $0xa8] sm:$0xff]
    %v148 = vld [vmem:[#allocation9 + $0xb0] sm:$0xff]
    %v149 = vld [vmem:[#allocation9 + $0xb8] sm:$0xff]
    %v150 = vld [vmem:[#allocation9 + $0xc0] sm:$0xff]
    %v151 = vld [vmem:[#allocation9 + $0xc8] sm:$0xff]
    %v152 = vld [vmem:[#allocation9 + $0xd0] sm:$0xff]
    %v153 = vld [vmem:[#allocation9 + $0xd8] sm:$0xff]
    %v154 = vld [vmem:[#allocation9 + $0xe0] sm:$0xff]
    %v155 = vld [vmem:[#allocation9 + $0xe8] sm:$0xff]
    %v156 = vld [vmem:[#allocation9 + $0xf0] sm:$0xff]
    %v157 = vld [vmem:[#allocation9 + $0xf8] sm:$0xff]
    %v158 = vld [vmem:[#allocation9 + $0x100] sm:$0xff]
    %v159 = vld [vmem:[#allocation9 + $0x108] sm:$0xff]
    %v160 = vld [vmem:[#allocation9 + $0x110] sm:$0xff]
    %v161 = vld [vmem:[#allocation9 + $0x118] sm:$0xff]
    %v162 = vld [vmem:[#allocation9 + $0x120] sm:$0xff]
    %v163 = vld [vmem:[#allocation9 + $0x128] sm:$0xff]
    %v164 = vld [vmem:[#allocation9 + $0x130] sm:$0xff]
    %v165 = vld [vmem:[#allocation9 + $0x138] sm:$0xff]
    %v166 = vld [vmem:[#allocation9 + $0x140] sm:$0xff]
    %v167 = vld [vmem:[#allocation9 + $0x148] sm:$0xff]
    %v168 = vld [vmem:[#allocation9 + $0x150] sm:$0xff]
    %v169 = vld [vmem:[#allocation9 + $0x158] sm:$0xff]
    %v170 = vld [vmem:[#allocation9 + $0x160] sm:$0xff]
    %v171 = vld [vmem:[#allocation9 + $0x168] sm:$0xff]
    %v172 = vld [vmem:[#allocation9 + $0x170] sm:$0xff]
    %v173 = vld [vmem:[#allocation9 + $0x178] sm:$0xff]
    %v174 = vld [vmem:[#allocation9 + $0x180] sm:$0xff]
    %v175 = vld [vmem:[#allocation9 + $0x188] sm:$0xff]
    %v176 = vld [vmem:[#allocation9 + $0x190] sm:$0xff]
    %v177 = vld [vmem:[#allocation9 + $0x198] sm:$0xff]
    %v178 = vld [vmem:[#allocation9 + $0x1a0] sm:$0xff]
    %v179 = vld [vmem:[#allocation9 + $0x1a8] sm:$0xff]
    %v180 = vld [vmem:[#allocation9 + $0x1b0] sm:$0xff]
    %v181 = vld [vmem:[#allocation9 + $0x1b8] sm:$0xff]
    %v182 = vld [vmem:[#allocation9 + $0x1c0] sm:$0xff]
    %v183 = vld [vmem:[#allocation9 + $0x1c8] sm:$0xff]
    %v184 = vld [vmem:[#allocation9 + $0x1d0] sm:$0xff]
    %v185 = vld [vmem:[#allocation9 + $0x1d8] sm:$0xff]
    %v186 = vld [vmem:[#allocation9 + $0x1e0] sm:$0xff]
    %v187 = vld [vmem:[#allocation9 + $0x1e8] sm:$0xff]
    %v188 = vld [vmem:[#allocation9 + $0x1f0] sm:$0xff]
    %v189 = vld [vmem:[#allocation9 + $0x1f8] sm:$0xff]
    %v190 = vld [vmem:[#allocation11] sm:$0xf]
    %v192 = vperm.slane %v190, 0
    %v193 = vperm.slane %v190, 1
    %v194 = vperm.slane %v190, 2
    %v195 = vperm.slane %v190, 3
    %v264 = vunpack.c.l.b16 %v126
    %v265 = vunpack.c.h.b16 %v126
    %v266 = vunpack.c.l.b16 %v127
    %v267 = vunpack.c.h.b16 %v127
    %v268 = vunpack.c.l.b16 %v128
    %v269 = vunpack.c.h.b16 %v128
    %v270 = vunpack.c.l.b16 %v129
    %v271 = vunpack.c.h.b16 %v129
    %v272 = vunpack.c.l.b16 %v130
    %v273 = vunpack.c.h.b16 %v130
    %v274 = vunpack.c.l.b16 %v131
    %v275 = vunpack.c.h.b16 %v131
    %v276 = vunpack.c.l.b16 %v132
    %v277 = vunpack.c.h.b16 %v132
    %v278 = vunpack.c.l.b16 %v133
    %v279 = vunpack.c.h.b16 %v133
    %v280 = vunpack.c.l.b16 %v134
    %v281 = vunpack.c.h.b16 %v134
    %v282 = vunpack.c.l.b16 %v135
    %v283 = vunpack.c.h.b16 %v135
    %v284 = vunpack.c.l.b16 %v136
    %v285 = vunpack.c.h.b16 %v136
    %v286 = vunpack.c.l.b16 %v137
    %v287 = vunpack.c.h.b16 %v137
    %v288 = vunpack.c.l.b16 %v138
    %v289 = vunpack.c.h.b16 %v138
    %v290 = vunpack.c.l.b16 %v139
    %v291 = vunpack.c.h.b16 %v139
    %v292 = vunpack.c.l.b16 %v140
    %v293 = vunpack.c.h.b16 %v140
    %v294 = vunpack.c.l.b16 %v141
    %v295 = vunpack.c.h.b16 %v141
    %v296 = vunpack.c.l.b16 %v142
    %v297 = vunpack.c.h.b16 %v142
    %v298 = vunpack.c.l.b16 %v143
    %v299 = vunpack.c.h.b16 %v143
    %v300 = vunpack.c.l.b16 %v144
    %v301 = vunpack.c.h.b16 %v144
    %v302 = vunpack.c.l.b16 %v145
    %v303 = vunpack.c.h.b16 %v145
    %v304 = vunpack.c.l.b16 %v146
    %v305 = vunpack.c.h.b16 %v146
    %v306 = vunpack.c.l.b16 %v147
    %v307 = vunpack.c.h.b16 %v147
    %v308 = vunpack.c.l.b16 %v148
    %v309 = vunpack.c.h.b16 %v148
    %v310 = vunpack.c.l.b16 %v149
    %v311 = vunpack.c.h.b16 %v149
    %v312 = vunpack.c.l.b16 %v150
    %v313 = vunpack.c.h.b16 %v150
    %v314 = vunpack.c.l.b16 %v151
    %v315 = vunpack.c.h.b16 %v151
    %v316 = vunpack.c.l.b16 %v152
    %v317 = vunpack.c.h.b16 %v152
    %v318 = vunpack.c.l.b16 %v153
    %v319 = vunpack.c.h.b16 %v153
    %v320 = vunpack.c.l.b16 %v154
    %v321 = vunpack.c.h.b16 %v154
    %v322 = vunpack.c.l.b16 %v155
    %v323 = vunpack.c.h.b16 %v155
    %v324 = vunpack.c.l.b16 %v156
    %v325 = vunpack.c.h.b16 %v156
    %v326 = vunpack.c.l.b16 %v157
    %v327 = vunpack.c.h.b16 %v157
    %v328 = vunpack.c.l.b16 %v158
    %v329 = vunpack.c.h.b16 %v158
    %v330 = vunpack.c.l.b16 %v159
    %v331 = vunpack.c.h.b16 %v159
    %v332 = vunpack.c.l.b16 %v160
    %v333 = vunpack.c.h.b16 %v160
    %v334 = vunpack.c.l.b16 %v161
    %v335 = vunpack.c.h.b16 %v161
    %v336 = vunpack.c.l.b16 %v162
    %v337 = vunpack.c.h.b16 %v162
    %v338 = vunpack.c.l.b16 %v163
    %v339 = vunpack.c.h.b16 %v163
    %v340 = vunpack.c.l.b16 %v164
    %v341 = vunpack.c.h.b16 %v164
    %v342 = vunpack.c.l.b16 %v165
    %v343 = vunpack.c.h.b16 %v165
    %v344 = vunpack.c.l.b16 %v166
    %v345 = vunpack.c.h.b16 %v166
    %v346 = vunpack.c.l.b16 %v167
    %v347 = vunpack.c.h.b16 %v167
    %v348 = vunpack.c.l.b16 %v168
    %v349 = vunpack.c.h.b16 %v168
    %v350 = vunpack.c.l.b16 %v169
    %v351 = vunpack.c.h.b16 %v169
    %v352 = vunpack.c.l.b16 %v170
    %v353 = vunpack.c.h.b16 %v170
    %v354 = vunpack.c.l.b16 %v171
    %v355 = vunpack.c.h.b16 %v171
    %v356 = vunpack.c.l.b16 %v172
    %v357 = vunpack.c.h.b16 %v172
    %v358 = vunpack.c.l.b16 %v173
    %v359 = vunpack.c.h.b16 %v173
    %v360 = vunpack.c.l.b16 %v174
    %v361 = vunpack.c.h.b16 %v174
    %v362 = vunpack.c.l.b16 %v175
    %v363 = vunpack.c.h.b16 %v175
    %v364 = vunpack.c.l.b16 %v176
    %v365 = vunpack.c.h.b16 %v176
    %v366 = vunpack.c.l.b16 %v177
    %v367 = vunpack.c.h.b16 %v177
    %v368 = vunpack.c.l.b16 %v178
    %v369 = vunpack.c.h.b16 %v178
    %v370 = vunpack.c.l.b16 %v179
    %v371 = vunpack.c.h.b16 %v179
    %v372 = vunpack.c.l.b16 %v180
    %v373 = vunpack.c.h.b16 %v180
    %v374 = vunpack.c.l.b16 %v181
    %v375 = vunpack.c.h.b16 %v181
    %v376 = vunpack.c.l.b16 %v182
    %v377 = vunpack.c.h.b16 %v182
    %v378 = vunpack.c.l.b16 %v183
    %v379 = vunpack.c.h.b16 %v183
    %v380 = vunpack.c.l.b16 %v184
    %v381 = vunpack.c.h.b16 %v184
    %v382 = vunpack.c.l.b16 %v185
    %v383 = vunpack.c.h.b16 %v185
    %v384 = vunpack.c.l.b16 %v186
    %v385 = vunpack.c.h.b16 %v186
    %v386 = vunpack.c.l.b16 %v187
    %v387 = vunpack.c.h.b16 %v187
    %v388 = vunpack.c.l.b16 %v188
    %v389 = vunpack.c.h.b16 %v188
    %v390 = vunpack.c.l.b16 %v189
    %v391 = vunpack.c.h.b16 %v189
    %v392 = vpack.c.b16 %v268, %v264
    %v393 = vpack.c.b16 %v269, %v265
    %v394 = vpack.c.b16 %v270, %v266
    %v395 = vpack.c.b16 %v271, %v267
    %v396 = vpack.c.b16 %v276, %v272
    %v397 = vpack.c.b16 %v277, %v273
    %v398 = vpack.c.b16 %v278, %v274
    %v399 = vpack.c.b16 %v279, %v275
    %v400 = vpack.c.b16 %v284, %v280
    %v401 = vpack.c.b16 %v285, %v281
    %v402 = vpack.c.b16 %v286, %v282
    %v403 = vpack.c.b16 %v287, %v283
    %v404 = vpack.c.b16 %v292, %v288
    %v405 = vpack.c.b16 %v293, %v289
    %v406 = vpack.c.b16 %v294, %v290
    %v407 = vpack.c.b16 %v295, %v291
    %v408 = vpack.c.b16 %v300, %v296
    %v409 = vpack.c.b16 %v301, %v297
    %v410 = vpack.c.b16 %v302, %v298
    %v411 = vpack.c.b16 %v303, %v299
    %v412 = vpack.c.b16 %v308, %v304
    %v413 = vpack.c.b16 %v309, %v305
    %v414 = vpack.c.b16 %v310, %v306
    %v415 = vpack.c.b16 %v311, %v307
    %v416 = vpack.c.b16 %v316, %v312
    %v417 = vpack.c.b16 %v317, %v313
    %v418 = vpack.c.b16 %v318, %v314
    %v419 = vpack.c.b16 %v319, %v315
    %v420 = vpack.c.b16 %v324, %v320
    %v421 = vpack.c.b16 %v325, %v321
    %v422 = vpack.c.b16 %v326, %v322
    %v423 = vpack.c.b16 %v327, %v323
    %v424 = vpack.c.b16 %v332, %v328
    %v425 = vpack.c.b16 %v333, %v329
    %v426 = vpack.c.b16 %v334, %v330
    %v427 = vpack.c.b16 %v335, %v331
    %v428 = vpack.c.b16 %v340, %v336
    %v429 = vpack.c.b16 %v341, %v337
    %v430 = vpack.c.b16 %v342, %v338
    %v431 = vpack.c.b16 %v343, %v339
    %v432 = vpack.c.b16 %v348, %v344
    %v433 = vpack.c.b16 %v349, %v345
    %v434 = vpack.c.b16 %v350, %v346
    %v435 = vpack.c.b16 %v351, %v347
    %v436 = vpack.c.b16 %v356, %v352
    %v437 = vpack.c.b16 %v357, %v353
    %v438 = vpack.c.b16 %v358, %v354
    %v439 = vpack.c.b16 %v359, %v355
    %v440 = vpack.c.b16 %v364, %v360
    %v441 = vpack.c.b16 %v365, %v361
    %v442 = vpack.c.b16 %v366, %v362
    %v443 = vpack.c.b16 %v367, %v363
    %v444 = vpack.c.b16 %v372, %v368
    %v445 = vpack.c.b16 %v373, %v369
    %v446 = vpack.c.b16 %v374, %v370
    %v447 = vpack.c.b16 %v375, %v371
    %v448 = vpack.c.b16 %v380, %v376
    %v449 = vpack.c.b16 %v381, %v377
    %v450 = vpack.c.b16 %v382, %v378
    %v451 = vpack.c.b16 %v383, %v379
    %v452 = vpack.c.b16 %v388, %v384
    %v453 = vpack.c.b16 %v389, %v385
    %v454 = vpack.c.b16 %v390, %v386
    %v455 = vpack.c.b16 %v391, %v387
    %520 = vmatpush.bf16.msra.mxu0 %v420
    %521 = vmatpush.bf16.msra.mxu0 %v416
    %522 = vmatpush.bf16.msra.mxu0 %v412
    %523 = vmatpush.bf16.msra.mxu0 %v408
    %524 = vmatpush.bf16.msra.mxu0 %v404
    %525 = vmatpush.bf16.msra.mxu0 %v400
    %526 = vmatpush.bf16.msra.mxu0 %v396
    %527 = vmatpush.bf16.msra.mxu0 %v392
    %528 = vmatmul.bf16.gmra.mxu0 %v118
    %v529 = vpop.f32.mrf.mxu0
    %v530 = vadd.f32 %v192, %v529
    %v531 = vpop.f32.mrf.mxu0
    %v532 = vadd.f32 %v192, %v531
    %533 = vdwg.mxu0
    %534 = vmatpush.bf16.msra.mxu0 %v452
    %535 = vmatpush.bf16.msra.mxu0 %v448
    %536 = vmatpush.bf16.msra.mxu0 %v444
    %537 = vmatpush.bf16.msra.mxu0 %v440
    %538 = vmatpush.bf16.msra.mxu0 %v436
    %539 = vmatpush.bf16.msra.mxu0 %v432
    %540 = vmatpush.bf16.msra.mxu0 %v428
    %541 = vmatpush.bf16.msra.mxu0 %v424
    %542 = vmatmul.bf16.gmra.mxu0 %v124
    %v543 = vpop.f32.mrf.mxu0
    %v544 = vadd.f32 %v530, %v543
    %v545 = vpop.f32.mrf.mxu0
    %v546 = vadd.f32 %v532, %v545
    %547 = vdwg.mxu0
    %548 = vmatpush.bf16.msra.mxu0 %v421
    %549 = vmatpush.bf16.msra.mxu0 %v417
    %550 = vmatpush.bf16.msra.mxu0 %v413
    %551 = vmatpush.bf16.msra.mxu0 %v409
    %552 = vmatpush.bf16.msra.mxu0 %v405
    %553 = vmatpush.bf16.msra.mxu0 %v401
    %554 = vmatpush.bf16.msra.mxu0 %v397
    %555 = vmatpush.bf16.msra.mxu0 %v393
    %556 = vmatmul.bf16.gmra.mxu0 %v118
    %v557 = vpop.f32.mrf.mxu0
    %v558 = vadd.f32 %v193, %v557
    %v559 = vpop.f32.mrf.mxu0
    %v560 = vadd.f32 %v193, %v559
    %561 = vdwg.mxu0
    %562 = vmatpush.bf16.msra.mxu0 %v453
    %563 = vmatpush.bf16.msra.mxu0 %v449
    %564 = vmatpush.bf16.msra.mxu0 %v445
    %565 = vmatpush.bf16.msra.mxu0 %v441
    %566 = vmatpush.bf16.msra.mxu0 %v437
    %567 = vmatpush.bf16.msra.mxu0 %v433
    %568 = vmatpush.bf16.msra.mxu0 %v429
    %569 = vmatpush.bf16.msra.mxu0 %v425
    %570 = vmatmul.bf16.gmra.mxu0 %v124
    %v571 = vpop.f32.mrf.mxu0
    %v572 = vadd.f32 %v558, %v571
    %v573 = vpop.f32.mrf.mxu0
    %v574 = vadd.f32 %v560, %v573
    %575 = vdwg.mxu0
    %576 = vmatpush.bf16.msra.mxu0 %v422
    %577 = vmatpush.bf16.msra.mxu0 %v418
    %578 = vmatpush.bf16.msra.mxu0 %v414
    %579 = vmatpush.bf16.msra.mxu0 %v410
    %580 = vmatpush.bf16.msra.mxu0 %v406
    %581 = vmatpush.bf16.msra.mxu0 %v402
    %582 = vmatpush.bf16.msra.mxu0 %v398
    %583 = vmatpush.bf16.msra.mxu0 %v394
    %584 = vmatmul.bf16.gmra.mxu0 %v118
    %v585 = vpop.f32.mrf.mxu0
    %v586 = vadd.f32 %v194, %v585
    %v587 = vpop.f32.mrf.mxu0
    %v588 = vadd.f32 %v194, %v587
    %589 = vdwg.mxu0
    %590 = vmatpush.bf16.msra.mxu0 %v454
    %591 = vmatpush.bf16.msra.mxu0 %v450
    %592 = vmatpush.bf16.msra.mxu0 %v446
    %593 = vmatpush.bf16.msra.mxu0 %v442
    %594 = vmatpush.bf16.msra.mxu0 %v438
    %595 = vmatpush.bf16.msra.mxu0 %v434
    %596 = vmatpush.bf16.msra.mxu0 %v430
    %597 = vmatpush.bf16.msra.mxu0 %v426
    %598 = vmatmul.bf16.gmra.mxu0 %v124
    %v599 = vpop.f32.mrf.mxu0
    %v600 = vadd.f32 %v586, %v599
    %v601 = vpop.f32.mrf.mxu0
    %v602 = vadd.f32 %v588, %v601
    %603 = vdwg.mxu0
    %604 = vmatpush.bf16.msra.mxu0 %v423
    %605 = vmatpush.bf16.msra.mxu0 %v419
    %606 = vmatpush.bf16.msra.mxu0 %v415
    %607 = vmatpush.bf16.msra.mxu0 %v411
    %608 = vmatpush.bf16.msra.mxu0 %v407
    %609 = vmatpush.bf16.msra.mxu0 %v403
    %610 = vmatpush.bf16.msra.mxu0 %v399
    %611 = vmatpush.bf16.msra.mxu0 %v395
    %612 = vmatmul.bf16.gmra.mxu0 %v118
    %v613 = vpop.f32.mrf.mxu0
    %v614 = vadd.f32 %v195, %v613
    %v615 = vpop.f32.mrf.mxu0
    %v616 = vadd.f32 %v195, %v615
    %617 = vdwg.mxu0
    %618 = vmatpush.bf16.msra.mxu0 %v455
    %619 = vmatpush.bf16.msra.mxu0 %v451
    %620 = vmatpush.bf16.msra.mxu0 %v447
    %621 = vmatpush.bf16.msra.mxu0 %v443
    %622 = vmatpush.bf16.msra.mxu0 %v439
    %623 = vmatpush.bf16.msra.mxu0 %v435
    %624 = vmatpush.bf16.msra.mxu0 %v431
    %625 = vmatpush.bf16.msra.mxu0 %v427
    %626 = vmatmul.bf16.gmra.mxu0 %v124
    %v627 = vpop.f32.mrf.mxu0
    %v628 = vadd.f32 %v614, %v627
    %v629 = vpop.f32.mrf.mxu0
    %v630 = vadd.f32 %v616, %v629
    %631 = vdwg.mxu0
    %v632 = vxor.u32 %v544, 2147483648
    %v633 = vxor.u32 %v572, 2147483648
    %v634 = vxor.u32 %v600, 2147483648
    %v635 = vxor.u32 %v546, 2147483648
    %v636 = vxor.u32 %v574, 2147483648
    %v637 = vxor.u32 %v602, 2147483648
    %v638 = vmul.f32 %v632, 1.442695
    %v639 = vpow.pop %v638
    %v640 = vmul.f32 %v633, 1.442695
    %v641 = vpow.pop %v640
    %v642 = vmul.f32 %v634, 1.442695
    %v643 = vpow.pop %v642
    %v644 = vmul.f32 %v635, 1.442695
    %v645 = vpow.pop %v644
    %v646 = vmul.f32 %v636, 1.442695
    %v647 = vpow.pop %v646
    %v648 = vmul.f32 %v637, 1.442695
    %v649 = vpow.pop %v648
    %v650 = vadd.f32 %v639, 1.0
    %v651 = vadd.f32 %v641, 1.0
    %v652 = vadd.f32 %v643, 1.0
    %v653 = vadd.f32 %v645, 1.0
    %v654 = vadd.f32 %v647, 1.0
    %v655 = vadd.f32 %v649, 1.0
    %v656 = vrcp.pop %v650
    %v657 = vmul.f32 %v650, %v656
    %v658 = vsub.f32 1.0, %v657
    %v659 = vmul.f32 %v656, %v658
    %v660 = vadd.f32 %v656, %v659
    %vm661 = vweird.f32 %v650
    %vm662 = vweird.f32 %v656
    %vm663 = vmor %vm661, %vm662
    %v664 = vsel %vm663, %v656, %v660
    %v665 = vand.u32 2147483647, %v650
    %vm666 = vcmp.eq.f32.partialorder %v665, 8.507059e+37
    %v667 = vand.u32 %v650, 2147483648
    %v668 = vor.u32 1.1754944e-38, %v667
    %v669 = vsel %vm666, %v668, %v664
    %v670 = vmul.f32 1.0, %v669
    %v671 = vrcp.pop %v651
    %v672 = vmul.f32 %v651, %v671
    %v673 = vsub.f32 1.0, %v672
    %v674 = vmul.f32 %v671, %v673
    %v675 = vadd.f32 %v671, %v674
    %vm676 = vweird.f32 %v651
    %vm677 = vweird.f32 %v671
    %vm678 = vmor %vm676, %vm677
    %v679 = vsel %vm678, %v671, %v675
    %v680 = vand.u32 2147483647, %v651
    %vm681 = vcmp.eq.f32.partialorder %v680, 8.507059e+37
    %v682 = vand.u32 %v651, 2147483648
    %v683 = vor.u32 1.1754944e-38, %v682
    %v684 = vsel %vm681, %v683, %v679
    %v685 = vmul.f32 1.0, %v684
    %v686 = vrcp.pop %v652
    %v687 = vmul.f32 %v652, %v686
    %v688 = vsub.f32 1.0, %v687
    %v689 = vmul.f32 %v686, %v688
    %v690 = vadd.f32 %v686, %v689
    %vm691 = vweird.f32 %v652
    %vm692 = vweird.f32 %v686
    %vm693 = vmor %vm691, %vm692
    %v694 = vsel %vm693, %v686, %v690
    %v695 = vand.u32 2147483647, %v652
    %vm696 = vcmp.eq.f32.partialorder %v695, 8.507059e+37
    %v697 = vand.u32 %v652, 2147483648
    %v698 = vor.u32 1.1754944e-38, %v697
    %v699 = vsel %vm696, %v698, %v694
    %v700 = vmul.f32 1.0, %v699
    %v701 = vrcp.pop %v653
    %v702 = vmul.f32 %v653, %v701
    %v703 = vsub.f32 1.0, %v702
    %v704 = vmul.f32 %v701, %v703
    %v705 = vadd.f32 %v701, %v704
    %vm706 = vweird.f32 %v653
    %vm707 = vweird.f32 %v701
    %vm708 = vmor %vm706, %vm707
    %v709 = vsel %vm708, %v701, %v705
    %v710 = vand.u32 2147483647, %v653
    %vm711 = vcmp.eq.f32.partialorder %v710, 8.507059e+37
    %v712 = vand.u32 %v653, 2147483648
    %v713 = vor.u32 1.1754944e-38, %v712
    %v714 = vsel %vm711, %v713, %v709
    %v715 = vmul.f32 1.0, %v714
    %v716 = vrcp.pop %v654
    %v717 = vmul.f32 %v654, %v716
    %v718 = vsub.f32 1.0, %v717
    %v719 = vmul.f32 %v716, %v718
    %v720 = vadd.f32 %v716, %v719
    %vm721 = vweird.f32 %v654
    %vm722 = vweird.f32 %v716
    %vm723 = vmor %vm721, %vm722
    %v724 = vsel %vm723, %v716, %v720
    %v725 = vand.u32 2147483647, %v654
    %vm726 = vcmp.eq.f32.partialorder %v725, 8.507059e+37
    %v727 = vand.u32 %v654, 2147483648
    %v728 = vor.u32 1.1754944e-38, %v727
    %v729 = vsel %vm726, %v728, %v724
    %v730 = vmul.f32 1.0, %v729
    %v731 = vrcp.pop %v655
    %v732 = vmul.f32 %v655, %v731
    %v733 = vsub.f32 1.0, %v732
    %v734 = vmul.f32 %v731, %v733
    %v735 = vadd.f32 %v731, %v734
    %vm736 = vweird.f32 %v655
    %vm737 = vweird.f32 %v731
    %vm738 = vmor %vm736, %vm737
    %v739 = vsel %vm738, %v731, %v735
    %v740 = vand.u32 2147483647, %v655
    %vm741 = vcmp.eq.f32.partialorder %v740, 8.507059e+37
    %v742 = vand.u32 %v655, 2147483648
    %v743 = vor.u32 1.1754944e-38, %v742
    %v744 = vsel %vm741, %v743, %v739
    %v745 = vmul.f32 1.0, %v744
    %v746 = vtanh.pop %v628
    %v747 = vtanh.pop %v630
    %v748 = vmul.f32 %v685, %v110
    %v749 = vmul.f32 %v730, %v111
    %v750 = vmul.f32 %v670, %v746
    %v751 = vmul.f32 %v715, %v747
    %v752 = vadd.f32 %v748, %v750
    %v753 = vadd.f32 %v749, %v751
    %v754 = vtanh.pop %v752
    %v755 = vtanh.pop %v753
    %v756 = vmul.f32 %v700, %v754
    %v757 = vmul.f32 %v745, %v755
    %s758 = sld [smem:[#allocation2]]
    %s759 = sadd.f32 %s758, 1.0
    %v760 = vstv %s759
    %v761 = vrcp.pop %v760
    %v762 = vmul.f32 %v760, %v761
    %v763 = vsub.f32 1.0, %v762
    %v764 = vmul.f32 %v761, %v763
    %v765 = vadd.f32 %v761, %v764
    %vm766 = vweird.f32 %v760
    %vm767 = vweird.f32 %v761
    %vm768 = vmor %vm766, %vm767
    %v769 = vsel %vm768, %v761, %v765
    %v770 = vand.u32 2147483647, %v760
    %vm771 = vcmp.eq.f32.partialorder %v770, 8.507059e+37
    %v772 = vand.u32 %v760, 2147483648
    %v773 = vor.u32 1.1754944e-38, %v772
    %v774 = vsel %vm771, %v773, %v769
    %s775 = vtos %v774
    %v776 = vstv %s758
    %v777 = vmul.f32 %v776, %v756
    %v778 = vmul.f32 %v776, %v757
    %v779 = vadd.f32 %v108, %v777
    %v780 = vadd.f32 %v109, %v778
    %v781 = vstv %s775
    %v782 = vmul.f32 %v779, %v781
    %v783 = vmul.f32 %v780, %v781
    %784 = vst [vmem:[#allocation12] sm:$0xff] %v782
    %785 = vst [vmem:[#allocation12 + $0x8] sm:$0xff] %v783
    %v786 = vmul.f32 %v776, %v752
    %v787 = vmul.f32 %v776, %v753
    %v788 = vadd.f32 %v110, %v786
    %v789 = vadd.f32 %v111, %v787
    %v790 = vmul.f32 %v788, %v781
    %v791 = vmul.f32 %v789, %v781
    %792 = vst [vmem:[#allocation13] sm:$0xff] %v790
    %793 = vst [vmem:[#allocation13 + $0x8] sm:$0xff] %v791
    %v794 = vpack.c.bf16 %v756, %v756
    %v795 = vpack.c.bf16 %v757, %v757
    %s796 = scalar_lea.vmem [#allocation6], 16
    %v797 = vld [vmem:[%s796] sm:$0xff]
    %v798 = vld [vmem:[%s796 + $0x8] sm:$0xff]
    %s799 = scalar_lea.vmem [#allocation8], 16
    %v800 = vld [vmem:[%s799] sm:$0xff]
    %v801 = vld [vmem:[%s799 + $0x8] sm:$0xff]
    %v802 = vpack.c.bf16 %v797, %v797
    %v803 = vpack.c.bf16 %v798, %v798
    %v806 = vunpack.c.l.b16 %v794
    %v807 = vunpack.c.l.b16 %v795
    %v808 = vpack.c.b16 %v807, %v806
    %v812 = vunpack.c.l.b16 %v802
    %v813 = vunpack.c.l.b16 %v803
    %v814 = vpack.c.b16 %v813, %v812
    %s816 = scalar_lea.vmem [#allocation9], 512
    %v817 = vld [vmem:[%s816] sm:$0xff]
    %v818 = vld [vmem:[%s816 + $0x8] sm:$0xff]
    %v819 = vld [vmem:[%s816 + $0x10] sm:$0xff]
    %v820 = vld [vmem:[%s816 + $0x18] sm:$0xff]
    %v821 = vld [vmem:[%s816 + $0x20] sm:$0xff]
    %v822 = vld [vmem:[%s816 + $0x28] sm:$0xff]
    %v823 = vld [vmem:[%s816 + $0x30] sm:$0xff]
    %v824 = vld [vmem:[%s816 + $0x38] sm:$0xff]
    %v825 = vld [vmem:[%s816 + $0x40] sm:$0xff]
    %v826 = vld [vmem:[%s816 + $0x48] sm:$0xff]
    %v827 = vld [vmem:[%s816 + $0x50] sm:$0xff]
    %v828 = vld [vmem:[%s816 + $0x58] sm:$0xff]
    %v829 = vld [vmem:[%s816 + $0x60] sm:$0xff]
    %v830 = vld [vmem:[%s816 + $0x68] sm:$0xff]
    %v831 = vld [vmem:[%s816 + $0x70] sm:$0xff]
    %v832 = vld [vmem:[%s816 + $0x78] sm:$0xff]
    %v833 = vld [vmem:[%s816 + $0x80] sm:$0xff]
    %v834 = vld [vmem:[%s816 + $0x88] sm:$0xff]
    %v835 = vld [vmem:[%s816 + $0x90] sm:$0xff]
    %v836 = vld [vmem:[%s816 + $0x98] sm:$0xff]
    %v837 = vld [vmem:[%s816 + $0xa0] sm:$0xff]
    %v838 = vld [vmem:[%s816 + $0xa8] sm:$0xff]
    %v839 = vld [vmem:[%s816 + $0xb0] sm:$0xff]
    %v840 = vld [vmem:[%s816 + $0xb8] sm:$0xff]
    %v841 = vld [vmem:[%s816 + $0xc0] sm:$0xff]
    %v842 = vld [vmem:[%s816 + $0xc8] sm:$0xff]
    %v843 = vld [vmem:[%s816 + $0xd0] sm:$0xff]
    %v844 = vld [vmem:[%s816 + $0xd8] sm:$0xff]
    %v845 = vld [vmem:[%s816 + $0xe0] sm:$0xff]
    %v846 = vld [vmem:[%s816 + $0xe8] sm:$0xff]
    %v847 = vld [vmem:[%s816 + $0xf0] sm:$0xff]
    %v848 = vld [vmem:[%s816 + $0xf8] sm:$0xff]
    %v849 = vld [vmem:[%s816 + $0x100] sm:$0xff]
    %v850 = vld [vmem:[%s816 + $0x108] sm:$0xff]
    %v851 = vld [vmem:[%s816 + $0x110] sm:$0xff]
    %v852 = vld [vmem:[%s816 + $0x118] sm:$0xff]
    %v853 = vld [vmem:[%s816 + $0x120] sm:$0xff]
    %v854 = vld [vmem:[%s816 + $0x128] sm:$0xff]
    %v855 = vld [vmem:[%s816 + $0x130] sm:$0xff]
    %v856 = vld [vmem:[%s816 + $0x138] sm:$0xff]
    %v857 = vld [vmem:[%s816 + $0x140] sm:$0xff]
    %v858 = vld [vmem:[%s816 + $0x148] sm:$0xff]
    %v859 = vld [vmem:[%s816 + $0x150] sm:$0xff]
    %v860 = vld [vmem:[%s816 + $0x158] sm:$0xff]
    %v861 = vld [vmem:[%s816 + $0x160] sm:$0xff]
    %v862 = vld [vmem:[%s816 + $0x168] sm:$0xff]
    %v863 = vld [vmem:[%s816 + $0x170] sm:$0xff]
    %v864 = vld [vmem:[%s816 + $0x178] sm:$0xff]
    %v865 = vld [vmem:[%s816 + $0x180] sm:$0xff]
    %v866 = vld [vmem:[%s816 + $0x188] sm:$0xff]
    %v867 = vld [vmem:[%s816 + $0x190] sm:$0xff]
    %v868 = vld [vmem:[%s816 + $0x198] sm:$0xff]
    %v869 = vld [vmem:[%s816 + $0x1a0] sm:$0xff]
    %v870 = vld [vmem:[%s816 + $0x1a8] sm:$0xff]
    %v871 = vld [vmem:[%s816 + $0x1b0] sm:$0xff]
    %v872 = vld [vmem:[%s816 + $0x1b8] sm:$0xff]
    %v873 = vld [vmem:[%s816 + $0x1c0] sm:$0xff]
    %v874 = vld [vmem:[%s816 + $0x1c8] sm:$0xff]
    %v875 = vld [vmem:[%s816 + $0x1d0] sm:$0xff]
    %v876 = vld [vmem:[%s816 + $0x1d8] sm:$0xff]
    %v877 = vld [vmem:[%s816 + $0x1e0] sm:$0xff]
    %v878 = vld [vmem:[%s816 + $0x1e8] sm:$0xff]
    %v879 = vld [vmem:[%s816 + $0x1f0] sm:$0xff]
    %v880 = vld [vmem:[%s816 + $0x1f8] sm:$0xff]
    %s881 = scalar_lea.vmem [#allocation11], 4
    %v882 = vld [vmem:[%s881] sm:$0xf]
    %v884 = vperm.slane %v882, 0
    %v885 = vperm.slane %v882, 1
    %v886 = vperm.slane %v882, 2
    %v887 = vperm.slane %v882, 3
    %v956 = vunpack.c.l.b16 %v817
    %v957 = vunpack.c.h.b16 %v817
    %v958 = vunpack.c.l.b16 %v818
    %v959 = vunpack.c.h.b16 %v818
    %v960 = vunpack.c.l.b16 %v819
    %v961 = vunpack.c.h.b16 %v819
    %v962 = vunpack.c.l.b16 %v820
    %v963 = vunpack.c.h.b16 %v820
    %v964 = vunpack.c.l.b16 %v821
    %v965 = vunpack.c.h.b16 %v821
    %v966 = vunpack.c.l.b16 %v822
    %v967 = vunpack.c.h.b16 %v822
    %v968 = vunpack.c.l.b16 %v823
    %v969 = vunpack.c.h.b16 %v823
    %v970 = vunpack.c.l.b16 %v824
    %v971 = vunpack.c.h.b16 %v824
    %v972 = vunpack.c.l.b16 %v825
    %v973 = vunpack.c.h.b16 %v825
    %v974 = vunpack.c.l.b16 %v826
    %v975 = vunpack.c.h.b16 %v826
    %v976 = vunpack.c.l.b16 %v827
    %v977 = vunpack.c.h.b16 %v827
    %v978 = vunpack.c.l.b16 %v828
    %v979 = vunpack.c.h.b16 %v828
    %v980 = vunpack.c.l.b16 %v829
    %v981 = vunpack.c.h.b16 %v829
    %v982 = vunpack.c.l.b16 %v830
    %v983 = vunpack.c.h.b16 %v830
    %v984 = vunpack.c.l.b16 %v831
    %v985 = vunpack.c.h.b16 %v831
    %v986 = vunpack.c.l.b16 %v832
    %v987 = vunpack.c.h.b16 %v832
    %v988 = vunpack.c.l.b16 %v833
    %v989 = vunpack.c.h.b16 %v833
    %v990 = vunpack.c.l.b16 %v834
    %v991 = vunpack.c.h.b16 %v834
    %v992 = vunpack.c.l.b16 %v835
    %v993 = vunpack.c.h.b16 %v835
    %v994 = vunpack.c.l.b16 %v836
    %v995 = vunpack.c.h.b16 %v836
    %v996 = vunpack.c.l.b16 %v837
    %v997 = vunpack.c.h.b16 %v837
    %v998 = vunpack.c.l.b16 %v838
    %v999 = vunpack.c.h.b16 %v838
    %v1000 = vunpack.c.l.b16 %v839
    %v1001 = vunpack.c.h.b16 %v839
    %v1002 = vunpack.c.l.b16 %v840
    %v1003 = vunpack.c.h.b16 %v840
    %v1004 = vunpack.c.l.b16 %v841
    %v1005 = vunpack.c.h.b16 %v841
    %v1006 = vunpack.c.l.b16 %v842
    %v1007 = vunpack.c.h.b16 %v842
    %v1008 = vunpack.c.l.b16 %v843
    %v1009 = vunpack.c.h.b16 %v843
    %v1010 = vunpack.c.l.b16 %v844
    %v1011 = vunpack.c.h.b16 %v844
    %v1012 = vunpack.c.l.b16 %v845
    %v1013 = vunpack.c.h.b16 %v845
    %v1014 = vunpack.c.l.b16 %v846
    %v1015 = vunpack.c.h.b16 %v846
    %v1016 = vunpack.c.l.b16 %v847
    %v1017 = vunpack.c.h.b16 %v847
    %v1018 = vunpack.c.l.b16 %v848
    %v1019 = vunpack.c.h.b16 %v848
    %v1020 = vunpack.c.l.b16 %v849
    %v1021 = vunpack.c.h.b16 %v849
    %v1022 = vunpack.c.l.b16 %v850
    %v1023 = vunpack.c.h.b16 %v850
    %v1024 = vunpack.c.l.b16 %v851
    %v1025 = vunpack.c.h.b16 %v851
    %v1026 = vunpack.c.l.b16 %v852
    %v1027 = vunpack.c.h.b16 %v852
    %v1028 = vunpack.c.l.b16 %v853
    %v1029 = vunpack.c.h.b16 %v853
    %v1030 = vunpack.c.l.b16 %v854
    %v1031 = vunpack.c.h.b16 %v854
    %v1032 = vunpack.c.l.b16 %v855
    %v1033 = vunpack.c.h.b16 %v855
    %v1034 = vunpack.c.l.b16 %v856
    %v1035 = vunpack.c.h.b16 %v856
    %v1036 = vunpack.c.l.b16 %v857
    %v1037 = vunpack.c.h.b16 %v857
    %v1038 = vunpack.c.l.b16 %v858
    %v1039 = vunpack.c.h.b16 %v858
    %v1040 = vunpack.c.l.b16 %v859
    %v1041 = vunpack.c.h.b16 %v859
    %v1042 = vunpack.c.l.b16 %v860
    %v1043 = vunpack.c.h.b16 %v860
    %v1044 = vunpack.c.l.b16 %v861
    %v1045 = vunpack.c.h.b16 %v861
    %v1046 = vunpack.c.l.b16 %v862
    %v1047 = vunpack.c.h.b16 %v862
    %v1048 = vunpack.c.l.b16 %v863
    %v1049 = vunpack.c.h.b16 %v863
    %v1050 = vunpack.c.l.b16 %v864
    %v1051 = vunpack.c.h.b16 %v864
    %v1052 = vunpack.c.l.b16 %v865
    %v1053 = vunpack.c.h.b16 %v865
    %v1054 = vunpack.c.l.b16 %v866
    %v1055 = vunpack.c.h.b16 %v866
    %v1056 = vunpack.c.l.b16 %v867
    %v1057 = vunpack.c.h.b16 %v867
    %v1058 = vunpack.c.l.b16 %v868
    %v1059 = vunpack.c.h.b16 %v868
    %v1060 = vunpack.c.l.b16 %v869
    %v1061 = vunpack.c.h.b16 %v869
    %v1062 = vunpack.c.l.b16 %v870
    %v1063 = vunpack.c.h.b16 %v870
    %v1064 = vunpack.c.l.b16 %v871
    %v1065 = vunpack.c.h.b16 %v871
    %v1066 = vunpack.c.l.b16 %v872
    %v1067 = vunpack.c.h.b16 %v872
    %v1068 = vunpack.c.l.b16 %v873
    %v1069 = vunpack.c.h.b16 %v873
    %v1070 = vunpack.c.l.b16 %v874
    %v1071 = vunpack.c.h.b16 %v874
    %v1072 = vunpack.c.l.b16 %v875
    %v1073 = vunpack.c.h.b16 %v875
    %v1074 = vunpack.c.l.b16 %v876
    %v1075 = vunpack.c.h.b16 %v876
    %v1076 = vunpack.c.l.b16 %v877
    %v1077 = vunpack.c.h.b16 %v877
    %v1078 = vunpack.c.l.b16 %v878
    %v1079 = vunpack.c.h.b16 %v878
    %v1080 = vunpack.c.l.b16 %v879
    %v1081 = vunpack.c.h.b16 %v879
    %v1082 = vunpack.c.l.b16 %v880
    %v1083 = vunpack.c.h.b16 %v880
    %v1084 = vpack.c.b16 %v960, %v956
    %v1085 = vpack.c.b16 %v961, %v957
    %v1086 = vpack.c.b16 %v962, %v958
    %v1087 = vpack.c.b16 %v963, %v959
    %v1088 = vpack.c.b16 %v968, %v964
    %v1089 = vpack.c.b16 %v969, %v965
    %v1090 = vpack.c.b16 %v970, %v966
    %v1091 = vpack.c.b16 %v971, %v967
    %v1092 = vpack.c.b16 %v976, %v972
    %v1093 = vpack.c.b16 %v977, %v973
    %v1094 = vpack.c.b16 %v978, %v974
    %v1095 = vpack.c.b16 %v979, %v975
    %v1096 = vpack.c.b16 %v984, %v980
    %v1097 = vpack.c.b16 %v985, %v981
    %v1098 = vpack.c.b16 %v986, %v982
    %v1099 = vpack.c.b16 %v987, %v983
    %v1100 = vpack.c.b16 %v992, %v988
    %v1101 = vpack.c.b16 %v993, %v989
    %v1102 = vpack.c.b16 %v994, %v990
    %v1103 = vpack.c.b16 %v995, %v991
    %v1104 = vpack.c.b16 %v1000, %v996
    %v1105 = vpack.c.b16 %v1001, %v997
    %v1106 = vpack.c.b16 %v1002, %v998
    %v1107 = vpack.c.b16 %v1003, %v999
    %v1108 = vpack.c.b16 %v1008, %v1004
    %v1109 = vpack.c.b16 %v1009, %v1005
    %v1110 = vpack.c.b16 %v1010, %v1006
    %v1111 = vpack.c.b16 %v1011, %v1007
    %v1112 = vpack.c.b16 %v1016, %v1012
    %v1113 = vpack.c.b16 %v1017, %v1013
    %v1114 = vpack.c.b16 %v1018, %v1014
    %v1115 = vpack.c.b16 %v1019, %v1015
    %v1116 = vpack.c.b16 %v1024, %v1020
    %v1117 = vpack.c.b16 %v1025, %v1021
    %v1118 = vpack.c.b16 %v1026, %v1022
    %v1119 = vpack.c.b16 %v1027, %v1023
    %v1120 = vpack.c.b16 %v1032, %v1028
    %v1121 = vpack.c.b16 %v1033, %v1029
    %v1122 = vpack.c.b16 %v1034, %v1030
    %v1123 = vpack.c.b16 %v1035, %v1031
    %v1124 = vpack.c.b16 %v1040, %v1036
    %v1125 = vpack.c.b16 %v1041, %v1037
    %v1126 = vpack.c.b16 %v1042, %v1038
    %v1127 = vpack.c.b16 %v1043, %v1039
    %v1128 = vpack.c.b16 %v1048, %v1044
    %v1129 = vpack.c.b16 %v1049, %v1045
    %v1130 = vpack.c.b16 %v1050, %v1046
    %v1131 = vpack.c.b16 %v1051, %v1047
    %v1132 = vpack.c.b16 %v1056, %v1052
    %v1133 = vpack.c.b16 %v1057, %v1053
    %v1134 = vpack.c.b16 %v1058, %v1054
    %v1135 = vpack.c.b16 %v1059, %v1055
    %v1136 = vpack.c.b16 %v1064, %v1060
    %v1137 = vpack.c.b16 %v1065, %v1061
    %v1138 = vpack.c.b16 %v1066, %v1062
    %v1139 = vpack.c.b16 %v1067, %v1063
    %v1140 = vpack.c.b16 %v1072, %v1068
    %v1141 = vpack.c.b16 %v1073, %v1069
    %v1142 = vpack.c.b16 %v1074, %v1070
    %v1143 = vpack.c.b16 %v1075, %v1071
    %v1144 = vpack.c.b16 %v1080, %v1076
    %v1145 = vpack.c.b16 %v1081, %v1077
    %v1146 = vpack.c.b16 %v1082, %v1078
    %v1147 = vpack.c.b16 %v1083, %v1079
    %1212 = vmatpush.bf16.msra.mxu0 %v1112
    %1213 = vmatpush.bf16.msra.mxu0 %v1108
    %1214 = vmatpush.bf16.msra.mxu0 %v1104
    %1215 = vmatpush.bf16.msra.mxu0 %v1100
    %1216 = vmatpush.bf16.msra.mxu0 %v1096
    %1217 = vmatpush.bf16.msra.mxu0 %v1092
    %1218 = vmatpush.bf16.msra.mxu0 %v1088
    %1219 = vmatpush.bf16.msra.mxu0 %v1084
    %1220 = vmatmul.bf16.gmra.mxu0 %v808
    %v1221 = vpop.f32.mrf.mxu0
    %v1222 = vadd.f32 %v884, %v1221
    %v1223 = vpop.f32.mrf.mxu0
    %v1224 = vadd.f32 %v884, %v1223
    %1225 = vdwg.mxu0
    %1226 = vmatpush.bf16.msra.mxu0 %v1144
    %1227 = vmatpush.bf16.msra.mxu0 %v1140
    %1228 = vmatpush.bf16.msra.mxu0 %v1136
    %1229 = vmatpush.bf16.msra.mxu0 %v1132
    %1230 = vmatpush.bf16.msra.mxu0 %v1128
    %1231 = vmatpush.bf16.msra.mxu0 %v1124
    %1232 = vmatpush.bf16.msra.mxu0 %v1120
    %1233 = vmatpush.bf16.msra.mxu0 %v1116
    %1234 = vmatmul.bf16.gmra.mxu0 %v814
    %v1235 = vpop.f32.mrf.mxu0
    %v1236 = vadd.f32 %v1222, %v1235
    %v1237 = vpop.f32.mrf.mxu0
    %v1238 = vadd.f32 %v1224, %v1237
    %1239 = vdwg.mxu0
    %1240 = vmatpush.bf16.msra.mxu0 %v1113
    %1241 = vmatpush.bf16.msra.mxu0 %v1109
    %1242 = vmatpush.bf16.msra.mxu0 %v1105
    %1243 = vmatpush.bf16.msra.mxu0 %v1101
    %1244 = vmatpush.bf16.msra.mxu0 %v1097
    %1245 = vmatpush.bf16.msra.mxu0 %v1093
    %1246 = vmatpush.bf16.msra.mxu0 %v1089
    %1247 = vmatpush.bf16.msra.mxu0 %v1085
    %1248 = vmatmul.bf16.gmra.mxu0 %v808
    %v1249 = vpop.f32.mrf.mxu0
    %v1250 = vadd.f32 %v885, %v1249
    %v1251 = vpop.f32.mrf.mxu0
    %v1252 = vadd.f32 %v885, %v1251
    %1253 = vdwg.mxu0
    %1254 = vmatpush.bf16.msra.mxu0 %v1145
    %1255 = vmatpush.bf16.msra.mxu0 %v1141
    %1256 = vmatpush.bf16.msra.mxu0 %v1137
    %1257 = vmatpush.bf16.msra.mxu0 %v1133
    %1258 = vmatpush.bf16.msra.mxu0 %v1129
    %1259 = vmatpush.bf16.msra.mxu0 %v1125
    %1260 = vmatpush.bf16.msra.mxu0 %v1121
    %1261 = vmatpush.bf16.msra.mxu0 %v1117
    %1262 = vmatmul.bf16.gmra.mxu0 %v814
    %v1263 = vpop.f32.mrf.mxu0
    %v1264 = vadd.f32 %v1250, %v1263
    %v1265 = vpop.f32.mrf.mxu0
    %v1266 = vadd.f32 %v1252, %v1265
    %1267 = vdwg.mxu0
    %1268 = vmatpush.bf16.msra.mxu0 %v1114
    %1269 = vmatpush.bf16.msra.mxu0 %v1110
    %1270 = vmatpush.bf16.msra.mxu0 %v1106
    %1271 = vmatpush.bf16.msra.mxu0 %v1102
    %1272 = vmatpush.bf16.msra.mxu0 %v1098
    %1273 = vmatpush.bf16.msra.mxu0 %v1094
    %1274 = vmatpush.bf16.msra.mxu0 %v1090
    %1275 = vmatpush.bf16.msra.mxu0 %v1086
    %1276 = vmatmul.bf16.gmra.mxu0 %v808
    %v1277 = vpop.f32.mrf.mxu0
    %v1278 = vadd.f32 %v886, %v1277
    %v1279 = vpop.f32.mrf.mxu0
    %v1280 = vadd.f32 %v886, %v1279
    %1281 = vdwg.mxu0
    %1282 = vmatpush.bf16.msra.mxu0 %v1146
    %1283 = vmatpush.bf16.msra.mxu0 %v1142
    %1284 = vmatpush.bf16.msra.mxu0 %v1138
    %1285 = vmatpush.bf16.msra.mxu0 %v1134
    %1286 = vmatpush.bf16.msra.mxu0 %v1130
    %1287 = vmatpush.bf16.msra.mxu0 %v1126
    %1288 = vmatpush.bf16.msra.mxu0 %v1122
    %1289 = vmatpush.bf16.msra.mxu0 %v1118
    %1290 = vmatmul.bf16.gmra.mxu0 %v814
    %v1291 = vpop.f32.mrf.mxu0
    %v1292 = vadd.f32 %v1278, %v1291
    %v1293 = vpop.f32.mrf.mxu0
    %v1294 = vadd.f32 %v1280, %v1293
    %1295 = vdwg.mxu0
    %1296 = vmatpush.bf16.msra.mxu0 %v1115
    %1297 = vmatpush.bf16.msra.mxu0 %v1111
    %1298 = vmatpush.bf16.msra.mxu0 %v1107
    %1299 = vmatpush.bf16.msra.mxu0 %v1103
    %1300 = vmatpush.bf16.msra.mxu0 %v1099
    %1301 = vmatpush.bf16.msra.mxu0 %v1095
    %1302 = vmatpush.bf16.msra.mxu0 %v1091
    %1303 = vmatpush.bf16.msra.mxu0 %v1087
    %1304 = vmatmul.bf16.gmra.mxu0 %v808
    %v1305 = vpop.f32.mrf.mxu0
    %v1306 = vadd.f32 %v887, %v1305
    %v1307 = vpop.f32.mrf.mxu0
    %v1308 = vadd.f32 %v887, %v1307
    %1309 = vdwg.mxu0
    %1310 = vmatpush.bf16.msra.mxu0 %v1147
    %1311 = vmatpush.bf16.msra.mxu0 %v1143
    %1312 = vmatpush.bf16.msra.mxu0 %v1139
    %1313 = vmatpush.bf16.msra.mxu0 %v1135
    %1314 = vmatpush.bf16.msra.mxu0 %v1131
    %1315 = vmatpush.bf16.msra.mxu0 %v1127
    %1316 = vmatpush.bf16.msra.mxu0 %v1123
    %1317 = vmatpush.bf16.msra.mxu0 %v1119
    %1318 = vmatmul.bf16.gmra.mxu0 %v814
    %v1319 = vpop.f32.mrf.mxu0
    %v1320 = vadd.f32 %v1306, %v1319
    %v1321 = vpop.f32.mrf.mxu0
    %v1322 = vadd.f32 %v1308, %v1321
    %1323 = vdwg.mxu0
    %v1324 = vxor.u32 %v1236, 2147483648
    %v1325 = vxor.u32 %v1264, 2147483648
    %v1326 = vxor.u32 %v1292, 2147483648
    %v1327 = vxor.u32 %v1238, 2147483648
    %v1328 = vxor.u32 %v1266, 2147483648
    %v1329 = vxor.u32 %v1294, 2147483648
    %v1330 = vmul.f32 %v1324, 1.442695
    %v1331 = vpow.pop %v1330
    %v1332 = vmul.f32 %v1325, 1.442695
    %v1333 = vpow.pop %v1332
    %v1334 = vmul.f32 %v1326, 1.442695
    %v1335 = vpow.pop %v1334
    %v1336 = vmul.f32 %v1327, 1.442695
    %v1337 = vpow.pop %v1336
    %v1338 = vmul.f32 %v1328, 1.442695
    %v1339 = vpow.pop %v1338
    %v1340 = vmul.f32 %v1329, 1.442695
    %v1341 = vpow.pop %v1340
    %v1342 = vadd.f32 %v1331, 1.0
    %v1343 = vadd.f32 %v1333, 1.0
    %v1344 = vadd.f32 %v1335, 1.0
    %v1345 = vadd.f32 %v1337, 1.0
    %v1346 = vadd.f32 %v1339, 1.0
    %v1347 = vadd.f32 %v1341, 1.0
    %v1348 = vrcp.pop %v1342
    %v1349 = vmul.f32 %v1342, %v1348
    %v1350 = vsub.f32 1.0, %v1349
    %v1351 = vmul.f32 %v1348, %v1350
    %v1352 = vadd.f32 %v1348, %v1351
    %vm1353 = vweird.f32 %v1342
    %vm1354 = vweird.f32 %v1348
    %vm1355 = vmor %vm1353, %vm1354
    %v1356 = vsel %vm1355, %v1348, %v1352
    %v1357 = vand.u32 2147483647, %v1342
    %vm1358 = vcmp.eq.f32.partialorder %v1357, 8.507059e+37
    %v1359 = vand.u32 %v1342, 2147483648
    %v1360 = vor.u32 1.1754944e-38, %v1359
    %v1361 = vsel %vm1358, %v1360, %v1356
    %v1362 = vmul.f32 1.0, %v1361
    %v1363 = vrcp.pop %v1343
    %v1364 = vmul.f32 %v1343, %v1363
    %v1365 = vsub.f32 1.0, %v1364
    %v1366 = vmul.f32 %v1363, %v1365
    %v1367 = vadd.f32 %v1363, %v1366
    %vm1368 = vweird.f32 %v1343
    %vm1369 = vweird.f32 %v1363
    %vm1370 = vmor %vm1368, %vm1369
    %v1371 = vsel %vm1370, %v1363, %v1367
    %v1372 = vand.u32 2147483647, %v1343
    %vm1373 = vcmp.eq.f32.partialorder %v1372, 8.507059e+37
    %v1374 = vand.u32 %v1343, 2147483648
    %v1375 = vor.u32 1.1754944e-38, %v1374
    %v1376 = vsel %vm1373, %v1375, %v1371
    %v1377 = vmul.f32 1.0, %v1376
    %v1378 = vrcp.pop %v1344
    %v1379 = vmul.f32 %v1344, %v1378
    %v1380 = vsub.f32 1.0, %v1379
    %v1381 = vmul.f32 %v1378, %v1380
    %v1382 = vadd.f32 %v1378, %v1381
    %vm1383 = vweird.f32 %v1344
    %vm1384 = vweird.f32 %v1378
    %vm1385 = vmor %vm1383, %vm1384
    %v1386 = vsel %vm1385, %v1378, %v1382
    %v1387 = vand.u32 2147483647, %v1344
    %vm1388 = vcmp.eq.f32.partialorder %v1387, 8.507059e+37
    %v1389 = vand.u32 %v1344, 2147483648
    %v1390 = vor.u32 1.1754944e-38, %v1389
    %v1391 = vsel %vm1388, %v1390, %v1386
    %v1392 = vmul.f32 1.0, %v1391
    %v1393 = vrcp.pop %v1345
    %v1394 = vmul.f32 %v1345, %v1393
    %v1395 = vsub.f32 1.0, %v1394
    %v1396 = vmul.f32 %v1393, %v1395
    %v1397 = vadd.f32 %v1393, %v1396
    %vm1398 = vweird.f32 %v1345
    %vm1399 = vweird.f32 %v1393
    %vm1400 = vmor %vm1398, %vm1399
    %v1401 = vsel %vm1400, %v1393, %v1397
    %v1402 = vand.u32 2147483647, %v1345
    %vm1403 = vcmp.eq.f32.partialorder %v1402, 8.507059e+37
    %v1404 = vand.u32 %v1345, 2147483648
    %v1405 = vor.u32 1.1754944e-38, %v1404
    %v1406 = vsel %vm1403, %v1405, %v1401
    %v1407 = vmul.f32 1.0, %v1406
    %v1408 = vrcp.pop %v1346
    %v1409 = vmul.f32 %v1346, %v1408
    %v1410 = vsub.f32 1.0, %v1409
    %v1411 = vmul.f32 %v1408, %v1410
    %v1412 = vadd.f32 %v1408, %v1411
    %vm1413 = vweird.f32 %v1346
    %vm1414 = vweird.f32 %v1408
    %vm1415 = vmor %vm1413, %vm1414
    %v1416 = vsel %vm1415, %v1408, %v1412
    %v1417 = vand.u32 2147483647, %v1346
    %vm1418 = vcmp.eq.f32.partialorder %v1417, 8.507059e+37
    %v1419 = vand.u32 %v1346, 2147483648
    %v1420 = vor.u32 1.1754944e-38, %v1419
    %v1421 = vsel %vm1418, %v1420, %v1416
    %v1422 = vmul.f32 1.0, %v1421
    %v1423 = vrcp.pop %v1347
    %v1424 = vmul.f32 %v1347, %v1423
    %v1425 = vsub.f32 1.0, %v1424
    %v1426 = vmul.f32 %v1423, %v1425
    %v1427 = vadd.f32 %v1423, %v1426
    %vm1428 = vweird.f32 %v1347
    %vm1429 = vweird.f32 %v1423
    %vm1430 = vmor %vm1428, %vm1429
    %v1431 = vsel %vm1430, %v1423, %v1427
    %v1432 = vand.u32 2147483647, %v1347
    %vm1433 = vcmp.eq.f32.partialorder %v1432, 8.507059e+37
    %v1434 = vand.u32 %v1347, 2147483648
    %v1435 = vor.u32 1.1754944e-38, %v1434
    %v1436 = vsel %vm1433, %v1435, %v1431
    %v1437 = vmul.f32 1.0, %v1436
    %v1438 = vtanh.pop %v1320
    %v1439 = vtanh.pop %v1322
    %v1440 = vmul.f32 %v1377, %v800
    %v1441 = vmul.f32 %v1422, %v801
    %v1442 = vmul.f32 %v1362, %v1438
    %v1443 = vmul.f32 %v1407, %v1439
    %v1444 = vadd.f32 %v1440, %v1442
    %v1445 = vadd.f32 %v1441, %v1443
    %v1446 = vtanh.pop %v1444
    %v1447 = vtanh.pop %v1445
    %v1448 = vmul.f32 %v1392, %v1446
    %v1449 = vmul.f32 %v1437, %v1447
    %s1450 = sld [smem:[#allocation2]]
    %s1451 = sadd.f32 %s1450, 1.0
    %v1452 = vstv %s1451
    %v1453 = vrcp.pop %v1452
    %v1454 = vmul.f32 %v1452, %v1453
    %v1455 = vsub.f32 1.0, %v1454
    %v1456 = vmul.f32 %v1453, %v1455
    %v1457 = vadd.f32 %v1453, %v1456
    %vm1458 = vweird.f32 %v1452
    %vm1459 = vweird.f32 %v1453
    %vm1460 = vmor %vm1458, %vm1459
    %v1461 = vsel %vm1460, %v1453, %v1457
    %v1462 = vand.u32 2147483647, %v1452
    %vm1463 = vcmp.eq.f32.partialorder %v1462, 8.507059e+37
    %v1464 = vand.u32 %v1452, 2147483648
    %v1465 = vor.u32 1.1754944e-38, %v1464
    %v1466 = vsel %vm1463, %v1465, %v1461
    %s1467 = vtos %v1466
    %v1468 = vstv %s1450
    %v1469 = vmul.f32 %v1468, %v1448
    %v1470 = vmul.f32 %v1468, %v1449
    %v1471 = vadd.f32 %v797, %v1469
    %v1472 = vadd.f32 %v798, %v1470
    %v1473 = vstv %s1467
    %v1474 = vmul.f32 %v1471, %v1473
    %v1475 = vmul.f32 %v1472, %v1473
    %s1476 = scalar_lea.vmem [#allocation12], 16
    %1477 = vst [vmem:[%s1476] sm:$0xff] %v1474
    %1478 = vst [vmem:[%s1476 + $0x8] sm:$0xff] %v1475
    %v1479 = vmul.f32 %v1468, %v1444
    %v1480 = vmul.f32 %v1468, %v1445
    %v1481 = vadd.f32 %v800, %v1479
    %v1482 = vadd.f32 %v801, %v1480
    %v1483 = vmul.f32 %v1481, %v1473
    %v1484 = vmul.f32 %v1482, %v1473
    %s1485 = scalar_lea.vmem [#allocation13], 16
    %1486 = vst [vmem:[%s1485] sm:$0xff] %v1483
    %1487 = vst [vmem:[%s1485 + $0x8] sm:$0xff] %v1484
    %v1488 = vpack.c.bf16 %v1448, %v1448
    %v1489 = vpack.c.bf16 %v1449, %v1449
    %s1490 = scalar_lea.vmem [#allocation6], 32
    %v1491 = vld [vmem:[%s1490] sm:$0xff]
    %v1492 = vld [vmem:[%s1490 + $0x8] sm:$0xff]
    %s1493 = scalar_lea.vmem [#allocation8], 32
    %v1494 = vld [vmem:[%s1493] sm:$0xff]
    %v1495 = vld [vmem:[%s1493 + $0x8] sm:$0xff]
    %v1496 = vpack.c.bf16 %v1491, %v1491
    %v1497 = vpack.c.bf16 %v1492, %v1492
    %v1500 = vunpack.c.l.b16 %v1488
    %v1501 = vunpack.c.l.b16 %v1489
    %v1502 = vpack.c.b16 %v1501, %v1500
    %v1506 = vunpack.c.l.b16 %v1496
    %v1507 = vunpack.c.l.b16 %v1497
    %v1508 = vpack.c.b16 %v1507, %v1506
    %s1510 = scalar_lea.vmem [#allocation9], 1024
    %v1511 = vld [vmem:[%s1510] sm:$0xff]
    %v1512 = vld [vmem:[%s1510 + $0x8] sm:$0xff]
    %v1513 = vld [vmem:[%s1510 + $0x10] sm:$0xff]
    %v1514 = vld [vmem:[%s1510 + $0x18] sm:$0xff]
    %v1515 = vld [vmem:[%s1510 + $0x20] sm:$0xff]
    %v1516 = vld [vmem:[%s1510 + $0x28] sm:$0xff]
    %v1517 = vld [vmem:[%s1510 + $0x30] sm:$0xff]
    %v1518 = vld [vmem:[%s1510 + $0x38] sm:$0xff]
    %v1519 = vld [vmem:[%s1510 + $0x40] sm:$0xff]
    %v1520 = vld [vmem:[%s1510 + $0x48] sm:$0xff]
    %v1521 = vld [vmem:[%s1510 + $0x50] sm:$0xff]
    %v1522 = vld [vmem:[%s1510 + $0x58] sm:$0xff]
    %v1523 = vld [vmem:[%s1510 + $0x60] sm:$0xff]
    %v1524 = vld [vmem:[%s1510 + $0x68] sm:$0xff]
    %v1525 = vld [vmem:[%s1510 + $0x70] sm:$0xff]
    %v1526 = vld [vmem:[%s1510 + $0x78] sm:$0xff]
    %v1527 = vld [vmem:[%s1510 + $0x80] sm:$0xff]
    %v1528 = vld [vmem:[%s1510 + $0x88] sm:$0xff]
    %v1529 = vld [vmem:[%s1510 + $0x90] sm:$0xff]
    %v1530 = vld [vmem:[%s1510 + $0x98] sm:$0xff]
    %v1531 = vld [vmem:[%s1510 + $0xa0] sm:$0xff]
    %v1532 = vld [vmem:[%s1510 + $0xa8] sm:$0xff]
    %v1533 = vld [vmem:[%s1510 + $0xb0] sm:$0xff]
    %v1534 = vld [vmem:[%s1510 + $0xb8] sm:$0xff]
    %v1535 = vld [vmem:[%s1510 + $0xc0] sm:$0xff]
    %v1536 = vld [vmem:[%s1510 + $0xc8] sm:$0xff]
    %v1537 = vld [vmem:[%s1510 + $0xd0] sm:$0xff]
    %v1538 = vld [vmem:[%s1510 + $0xd8] sm:$0xff]
    %v1539 = vld [vmem:[%s1510 + $0xe0] sm:$0xff]
    %v1540 = vld [vmem:[%s1510 + $0xe8] sm:$0xff]
    %v1541 = vld [vmem:[%s1510 + $0xf0] sm:$0xff]
    %v1542 = vld [vmem:[%s1510 + $0xf8] sm:$0xff]
    %v1543 = vld [vmem:[%s1510 + $0x100] sm:$0xff]
    %v1544 = vld [vmem:[%s1510 + $0x108] sm:$0xff]
    %v1545 = vld [vmem:[%s1510 + $0x110] sm:$0xff]
    %v1546 = vld [vmem:[%s1510 + $0x118] sm:$0xff]
    %v1547 = vld [vmem:[%s1510 + $0x120] sm:$0xff]
    %v1548 = vld [vmem:[%s1510 + $0x128] sm:$0xff]
    %v1549 = vld [vmem:[%s1510 + $0x130] sm:$0xff]
    %v1550 = vld [vmem:[%s1510 + $0x138] sm:$0xff]
    %v1551 = vld [vmem:[%s1510 + $0x140] sm:$0xff]
    %v1552 = vld [vmem:[%s1510 + $0x148] sm:$0xff]
    %v1553 = vld [vmem:[%s1510 + $0x150] sm:$0xff]
    %v1554 = vld [vmem:[%s1510 + $0x158] sm:$0xff]
    %v1555 = vld [vmem:[%s1510 + $0x160] sm:$0xff]
    %v1556 = vld [vmem:[%s1510 + $0x168] sm:$0xff]
    %v1557 = vld [vmem:[%s1510 + $0x170] sm:$0xff]
    %v1558 = vld [vmem:[%s1510 + $0x178] sm:$0xff]
    %v1559 = vld [vmem:[%s1510 + $0x180] sm:$0xff]
    %v1560 = vld [vmem:[%s1510 + $0x188] sm:$0xff]
    %v1561 = vld [vmem:[%s1510 + $0x190] sm:$0xff]
    %v1562 = vld [vmem:[%s1510 + $0x198] sm:$0xff]
    %v1563 = vld [vmem:[%s1510 + $0x1a0] sm:$0xff]
    %v1564 = vld [vmem:[%s1510 + $0x1a8] sm:$0xff]
    %v1565 = vld [vmem:[%s1510 + $0x1b0] sm:$0xff]
    %v1566 = vld [vmem:[%s1510 + $0x1b8] sm:$0xff]
    %v1567 = vld [vmem:[%s1510 + $0x1c0] sm:$0xff]
    %v1568 = vld [vmem:[%s1510 + $0x1c8] sm:$0xff]
    %v1569 = vld [vmem:[%s1510 + $0x1d0] sm:$0xff]
    %v1570 = vld [vmem:[%s1510 + $0x1d8] sm:$0xff]
    %v1571 = vld [vmem:[%s1510 + $0x1e0] sm:$0xff]
    %v1572 = vld [vmem:[%s1510 + $0x1e8] sm:$0xff]
    %v1573 = vld [vmem:[%s1510 + $0x1f0] sm:$0xff]
    %v1574 = vld [vmem:[%s1510 + $0x1f8] sm:$0xff]
    %s1575 = scalar_lea.vmem [#allocation11], 8
    %v1576 = vld [vmem:[%s1575] sm:$0xf]
    %v1578 = vperm.slane %v1576, 0
    %v1579 = vperm.slane %v1576, 1
    %v1580 = vperm.slane %v1576, 2
    %v1581 = vperm.slane %v1576, 3
    %v1650 = vunpack.c.l.b16 %v1511
    %v1651 = vunpack.c.h.b16 %v1511
    %v1652 = vunpack.c.l.b16 %v1512
    %v1653 = vunpack.c.h.b16 %v1512
    %v1654 = vunpack.c.l.b16 %v1513
    %v1655 = vunpack.c.h.b16 %v1513
    %v1656 = vunpack.c.l.b16 %v1514
    %v1657 = vunpack.c.h.b16 %v1514
    %v1658 = vunpack.c.l.b16 %v1515
    %v1659 = vunpack.c.h.b16 %v1515
    %v1660 = vunpack.c.l.b16 %v1516
    %v1661 = vunpack.c.h.b16 %v1516
    %v1662 = vunpack.c.l.b16 %v1517
    %v1663 = vunpack.c.h.b16 %v1517
    %v1664 = vunpack.c.l.b16 %v1518
    %v1665 = vunpack.c.h.b16 %v1518
    %v1666 = vunpack.c.l.b16 %v1519
    %v1667 = vunpack.c.h.b16 %v1519
    %v1668 = vunpack.c.l.b16 %v1520
    %v1669 = vunpack.c.h.b16 %v1520
    %v1670 = vunpack.c.l.b16 %v1521
    %v1671 = vunpack.c.h.b16 %v1521
    %v1672 = vunpack.c.l.b16 %v1522
    %v1673 = vunpack.c.h.b16 %v1522
    %v1674 = vunpack.c.l.b16 %v1523
    %v1675 = vunpack.c.h.b16 %v1523
    %v1676 = vunpack.c.l.b16 %v1524
    %v1677 = vunpack.c.h.b16 %v1524
    %v1678 = vunpack.c.l.b16 %v1525
    %v1679 = vunpack.c.h.b16 %v1525
    %v1680 = vunpack.c.l.b16 %v1526
    %v1681 = vunpack.c.h.b16 %v1526
    %v1682 = vunpack.c.l.b16 %v1527
    %v1683 = vunpack.c.h.b16 %v1527
    %v1684 = vunpack.c.l.b16 %v1528
    %v1685 = vunpack.c.h.b16 %v1528
    %v1686 = vunpack.c.l.b16 %v1529
    %v1687 = vunpack.c.h.b16 %v1529
    %v1688 = vunpack.c.l.b16 %v1530
    %v1689 = vunpack.c.h.b16 %v1530
    %v1690 = vunpack.c.l.b16 %v1531
    %v1691 = vunpack.c.h.b16 %v1531
    %v1692 = vunpack.c.l.b16 %v1532
    %v1693 = vunpack.c.h.b16 %v1532
    %v1694 = vunpack.c.l.b16 %v1533
    %v1695 = vunpack.c.h.b16 %v1533
    %v1696 = vunpack.c.l.b16 %v1534
    %v1697 = vunpack.c.h.b16 %v1534
    %v1698 = vunpack.c.l.b16 %v1535
    %v1699 = vunpack.c.h.b16 %v1535
    %v1700 = vunpack.c.l.b16 %v1536
    %v1701 = vunpack.c.h.b16 %v1536
    %v1702 = vunpack.c.l.b16 %v1537
    %v1703 = vunpack.c.h.b16 %v1537
    %v1704 = vunpack.c.l.b16 %v1538
    %v1705 = vunpack.c.h.b16 %v1538
    %v1706 = vunpack.c.l.b16 %v1539
    %v1707 = vunpack.c.h.b16 %v1539
    %v1708 = vunpack.c.l.b16 %v1540
    %v1709 = vunpack.c.h.b16 %v1540
    %v1710 = vunpack.c.l.b16 %v1541
    %v1711 = vunpack.c.h.b16 %v1541
    %v1712 = vunpack.c.l.b16 %v1542
    %v1713 = vunpack.c.h.b16 %v1542
    %v1714 = vunpack.c.l.b16 %v1543
    %v1715 = vunpack.c.h.b16 %v1543
    %v1716 = vunpack.c.l.b16 %v1544
    %v1717 = vunpack.c.h.b16 %v1544
    %v1718 = vunpack.c.l.b16 %v1545
    %v1719 = vunpack.c.h.b16 %v1545
    %v1720 = vunpack.c.l.b16 %v1546
    %v1721 = vunpack.c.h.b16 %v1546
    %v1722 = vunpack.c.l.b16 %v1547
    %v1723 = vunpack.c.h.b16 %v1547
    %v1724 = vunpack.c.l.b16 %v1548
    %v1725 = vunpack.c.h.b16 %v1548
    %v1726 = vunpack.c.l.b16 %v1549
    %v1727 = vunpack.c.h.b16 %v1549
    %v1728 = vunpack.c.l.b16 %v1550
    %v1729 = vunpack.c.h.b16 %v1550
    %v1730 = vunpack.c.l.b16 %v1551
    %v1731 = vunpack.c.h.b16 %v1551
    %v1732 = vunpack.c.l.b16 %v1552
    %v1733 = vunpack.c.h.b16 %v1552
    %v1734 = vunpack.c.l.b16 %v1553
    %v1735 = vunpack.c.h.b16 %v1553
    %v1736 = vunpack.c.l.b16 %v1554
    %v1737 = vunpack.c.h.b16 %v1554
    %v1738 = vunpack.c.l.b16 %v1555
    %v1739 = vunpack.c.h.b16 %v1555
    %v1740 = vunpack.c.l.b16 %v1556
    %v1741 = vunpack.c.h.b16 %v1556
    %v1742 = vunpack.c.l.b16 %v1557
    %v1743 = vunpack.c.h.b16 %v1557
    %v1744 = vunpack.c.l.b16 %v1558
    %v1745 = vunpack.c.h.b16 %v1558
    %v1746 = vunpack.c.l.b16 %v1559
    %v1747 = vunpack.c.h.b16 %v1559
    %v1748 = vunpack.c.l.b16 %v1560
    %v1749 = vunpack.c.h.b16 %v1560
    %v1750 = vunpack.c.l.b16 %v1561
    %v1751 = vunpack.c.h.b16 %v1561
    %v1752 = vunpack.c.l.b16 %v1562
    %v1753 = vunpack.c.h.b16 %v1562
    %v1754 = vunpack.c.l.b16 %v1563
    %v1755 = vunpack.c.h.b16 %v1563
    %v1756 = vunpack.c.l.b16 %v1564
    %v1757 = vunpack.c.h.b16 %v1564
    %v1758 = vunpack.c.l.b16 %v1565
    %v1759 = vunpack.c.h.b16 %v1565
    %v1760 = vunpack.c.l.b16 %v1566
    %v1761 = vunpack.c.h.b16 %v1566
    %v1762 = vunpack.c.l.b16 %v1567
    %v1763 = vunpack.c.h.b16 %v1567
    %v1764 = vunpack.c.l.b16 %v1568
    %v1765 = vunpack.c.h.b16 %v1568
    %v1766 = vunpack.c.l.b16 %v1569
    %v1767 = vunpack.c.h.b16 %v1569
    %v1768 = vunpack.c.l.b16 %v1570
    %v1769 = vunpack.c.h.b16 %v1570
    %v1770 = vunpack.c.l.b16 %v1571
    %v1771 = vunpack.c.h.b16 %v1571
    %v1772 = vunpack.c.l.b16 %v1572
    %v1773 = vunpack.c.h.b16 %v1572
    %v1774 = vunpack.c.l.b16 %v1573
    %v1775 = vunpack.c.h.b16 %v1573
    %v1776 = vunpack.c.l.b16 %v1574
    %v1777 = vunpack.c.h.b16 %v1574
    %v1778 = vpack.c.b16 %v1654, %v1650
    %v1779 = vpack.c.b16 %v1655, %v1651
    %v1780 = vpack.c.b16 %v1656, %v1652
    %v1781 = vpack.c.b16 %v1657, %v1653
    %v1782 = vpack.c.b16 %v1662, %v1658
    %v1783 = vpack.c.b16 %v1663, %v1659
    %v1784 = vpack.c.b16 %v1664, %v1660
    %v1785 = vpack.c.b16 %v1665, %v1661
    %v1786 = vpack.c.b16 %v1670, %v1666
    %v1787 = vpack.c.b16 %v1671, %v1667
    %v1788 = vpack.c.b16 %v1672, %v1668
    %v1789 = vpack.c.b16 %v1673, %v1669
    %v1790 = vpack.c.b16 %v1678, %v1674
    %v1791 = vpack.c.b16 %v1679, %v1675
    %v1792 = vpack.c.b16 %v1680, %v1676
    %v1793 = vpack.c.b16 %v1681, %v1677
    %v1794 = vpack.c.b16 %v1686, %v1682
    %v1795 = vpack.c.b16 %v1687, %v1683
    %v1796 = vpack.c.b16 %v1688, %v1684
    %v1797 = vpack.c.b16 %v1689, %v1685
    %v1798 = vpack.c.b16 %v1694, %v1690
    %v1799 = vpack.c.b16 %v1695, %v1691
    %v1800 = vpack.c.b16 %v1696, %v1692
    %v1801 = vpack.c.b16 %v1697, %v1693
    %v1802 = vpack.c.b16 %v1702, %v1698
    %v1803 = vpack.c.b16 %v1703, %v1699
    %v1804 = vpack.c.b16 %v1704, %v1700
    %v1805 = vpack.c.b16 %v1705, %v1701
    %v1806 = vpack.c.b16 %v1710, %v1706
    %v1807 = vpack.c.b16 %v1711, %v1707
    %v1808 = vpack.c.b16 %v1712, %v1708
    %v1809 = vpack.c.b16 %v1713, %v1709
    %v1810 = vpack.c.b16 %v1718, %v1714
    %v1811 = vpack.c.b16 %v1719, %v1715
    %v1812 = vpack.c.b16 %v1720, %v1716
    %v1813 = vpack.c.b16 %v1721, %v1717
    %v1814 = vpack.c.b16 %v1726, %v1722
    %v1815 = vpack.c.b16 %v1727, %v1723
    %v1816 = vpack.c.b16 %v1728, %v1724
    %v1817 = vpack.c.b16 %v1729, %v1725
    %v1818 = vpack.c.b16 %v1734, %v1730
    %v1819 = vpack.c.b16 %v1735, %v1731
    %v1820 = vpack.c.b16 %v1736, %v1732
    %v1821 = vpack.c.b16 %v1737, %v1733
    %v1822 = vpack.c.b16 %v1742, %v1738
    %v1823 = vpack.c.b16 %v1743, %v1739
    %v1824 = vpack.c.b16 %v1744, %v1740
    %v1825 = vpack.c.b16 %v1745, %v1741
    %v1826 = vpack.c.b16 %v1750, %v1746
    %v1827 = vpack.c.b16 %v1751, %v1747
    %v1828 = vpack.c.b16 %v1752, %v1748
    %v1829 = vpack.c.b16 %v1753, %v1749
    %v1830 = vpack.c.b16 %v1758, %v1754
    %v1831 = vpack.c.b16 %v1759, %v1755
    %v1832 = vpack.c.b16 %v1760, %v1756
    %v1833 = vpack.c.b16 %v1761, %v1757
    %v1834 = vpack.c.b16 %v1766, %v1762
    %v1835 = vpack.c.b16 %v1767, %v1763
    %v1836 = vpack.c.b16 %v1768, %v1764
    %v1837 = vpack.c.b16 %v1769, %v1765
    %v1838 = vpack.c.b16 %v1774, %v1770
    %v1839 = vpack.c.b16 %v1775, %v1771
    %v1840 = vpack.c.b16 %v1776, %v1772
    %v1841 = vpack.c.b16 %v1777, %v1773
    %1906 = vmatpush.bf16.msra.mxu0 %v1806
    %1907 = vmatpush.bf16.msra.mxu0 %v1802
    %1908 = vmatpush.bf16.msra.mxu0 %v1798
    %1909 = vmatpush.bf16.msra.mxu0 %v1794
    %1910 = vmatpush.bf16.msra.mxu0 %v1790
    %1911 = vmatpush.bf16.msra.mxu0 %v1786
    %1912 = vmatpush.bf16.msra.mxu0 %v1782
    %1913 = vmatpush.bf16.msra.mxu0 %v1778
    %1914 = vmatmul.bf16.gmra.mxu0 %v1502
    %v1915 = vpop.f32.mrf.mxu0
    %v1916 = vadd.f32 %v1578, %v1915
    %v1917 = vpop.f32.mrf.mxu0
    %v1918 = vadd.f32 %v1578, %v1917
    %1919 = vdwg.mxu0
    %1920 = vmatpush.bf16.msra.mxu0 %v1838
    %1921 = vmatpush.bf16.msra.mxu0 %v1834
    %1922 = vmatpush.bf16.msra.mxu0 %v1830
    %1923 = vmatpush.bf16.msra.mxu0 %v1826
    %1924 = vmatpush.bf16.msra.mxu0 %v1822
    %1925 = vmatpush.bf16.msra.mxu0 %v1818
    %1926 = vmatpush.bf16.msra.mxu0 %v1814
    %1927 = vmatpush.bf16.msra.mxu0 %v1810
    %1928 = vmatmul.bf16.gmra.mxu0 %v1508
    %v1929 = vpop.f32.mrf.mxu0
    %v1930 = vadd.f32 %v1916, %v1929
    %v1931 = vpop.f32.mrf.mxu0
    %v1932 = vadd.f32 %v1918, %v1931
    %1933 = vdwg.mxu0
    %1934 = vmatpush.bf16.msra.mxu0 %v1807
    %1935 = vmatpush.bf16.msra.mxu0 %v1803
    %1936 = vmatpush.bf16.msra.mxu0 %v1799
    %1937 = vmatpush.bf16.msra.mxu0 %v1795
    %1938 = vmatpush.bf16.msra.mxu0 %v1791
    %1939 = vmatpush.bf16.msra.mxu0 %v1787
    %1940 = vmatpush.bf16.msra.mxu0 %v1783
    %1941 = vmatpush.bf16.msra.mxu0 %v1779
    %1942 = vmatmul.bf16.gmra.mxu0 %v1502
    %v1943 = vpop.f32.mrf.mxu0
    %v1944 = vadd.f32 %v1579, %v1943
    %v1945 = vpop.f32.mrf.mxu0
    %v1946 = vadd.f32 %v1579, %v1945
    %1947 = vdwg.mxu0
    %1948 = vmatpush.bf16.msra.mxu0 %v1839
    %1949 = vmatpush.bf16.msra.mxu0 %v1835
    %1950 = vmatpush.bf16.msra.mxu0 %v1831
    %1951 = vmatpush.bf16.msra.mxu0 %v1827
    %1952 = vmatpush.bf16.msra.mxu0 %v1823
    %1953 = vmatpush.bf16.msra.mxu0 %v1819
    %1954 = vmatpush.bf16.msra.mxu0 %v1815
    %1955 = vmatpush.bf16.msra.mxu0 %v1811
    %1956 = vmatmul.bf16.gmra.mxu0 %v1508
    %v1957 = vpop.f32.mrf.mxu0
    %v1958 = vadd.f32 %v1944, %v1957
    %v1959 = vpop.f32.mrf.mxu0
    %v1960 = vadd.f32 %v1946, %v1959
    %1961 = vdwg.mxu0
    %1962 = vmatpush.bf16.msra.mxu0 %v1808
    %1963 = vmatpush.bf16.msra.mxu0 %v1804
    %1964 = vmatpush.bf16.msra.mxu0 %v1800
    %1965 = vmatpush.bf16.msra.mxu0 %v1796
    %1966 = vmatpush.bf16.msra.mxu0 %v1792
    %1967 = vmatpush.bf16.msra.mxu0 %v1788
    %1968 = vmatpush.bf16.msra.mxu0 %v1784
    %1969 = vmatpush.bf16.msra.mxu0 %v1780
    %1970 = vmatmul.bf16.gmra.mxu0 %v1502
    %v1971 = vpop.f32.mrf.mxu0
    %v1972 = vadd.f32 %v1580, %v1971
    %v1973 = vpop.f32.mrf.mxu0
    %v1974 = vadd.f32 %v1580, %v1973
    %1975 = vdwg.mxu0
    %1976 = vmatpush.bf16.msra.mxu0 %v1840
    %1977 = vmatpush.bf16.msra.mxu0 %v1836
    %1978 = vmatpush.bf16.msra.mxu0 %v1832
    %1979 = vmatpush.bf16.msra.mxu0 %v1828
    %1980 = vmatpush.bf16.msra.mxu0 %v1824
    %1981 = vmatpush.bf16.msra.mxu0 %v1820
    %1982 = vmatpush.bf16.msra.mxu0 %v1816
    %1983 = vmatpush.bf16.msra.mxu0 %v1812
    %1984 = vmatmul.bf16.gmra.mxu0 %v1508
    %v1985 = vpop.f32.mrf.mxu0
    %v1986 = vadd.f32 %v1972, %v1985
    %v1987 = vpop.f32.mrf.mxu0
    %v1988 = vadd.f32 %v1974, %v1987
    %1989 = vdwg.mxu0
    %1990 = vmatpush.bf16.msra.mxu0 %v1809
    %1991 = vmatpush.bf16.msra.mxu0 %v1805
    %1992 = vmatpush.bf16.msra.mxu0 %v1801
    %1993 = vmatpush.bf16.msra.mxu0 %v1797
    %1994 = vmatpush.bf16.msra.mxu0 %v1793
    %1995 = vmatpush.bf16.msra.mxu0 %v1789
    %1996 = vmatpush.bf16.msra.mxu0 %v1785
    %1997 = vmatpush.bf16.msra.mxu0 %v1781
    %1998 = vmatmul.bf16.gmra.mxu0 %v1502
    %v1999 = vpop.f32.mrf.mxu0
    %v2000 = vadd.f32 %v1581, %v1999
    %v2001 = vpop.f32.mrf.mxu0
    %v2002 = vadd.f32 %v1581, %v2001
    %2003 = vdwg.mxu0
    %2004 = vmatpush.bf16.msra.mxu0 %v1841
    %2005 = vmatpush.bf16.msra.mxu0 %v1837
    %2006 = vmatpush.bf16.msra.mxu0 %v1833
    %2007 = vmatpush.bf16.msra.mxu0 %v1829
    %2008 = vmatpush.bf16.msra.mxu0 %v1825
    %2009 = vmatpush.bf16.msra.mxu0 %v1821
    %2010 = vmatpush.bf16.msra.mxu0 %v1817
    %2011 = vmatpush.bf16.msra.mxu0 %v1813
    %2012 = vmatmul.bf16.gmra.mxu0 %v1508
    %v2013 = vpop.f32.mrf.mxu0
    %v2014 = vadd.f32 %v2000, %v2013
    %v2015 = vpop.f32.mrf.mxu0
    %v2016 = vadd.f32 %v2002, %v2015
    %2017 = vdwg.mxu0
    %v2018 = vxor.u32 %v1930, 2147483648
    %v2019 = vxor.u32 %v1958, 2147483648
    %v2020 = vxor.u32 %v1986, 2147483648
    %v2021 = vxor.u32 %v1932, 2147483648
    %v2022 = vxor.u32 %v1960, 2147483648
    %v2023 = vxor.u32 %v1988, 2147483648
    %v2024 = vmul.f32 %v2018, 1.442695
    %v2025 = vpow.pop %v2024
    %v2026 = vmul.f32 %v2019, 1.442695
    %v2027 = vpow.pop %v2026
    %v2028 = vmul.f32 %v2020, 1.442695
    %v2029 = vpow.pop %v2028
    %v2030 = vmul.f32 %v2021, 1.442695
    %v2031 = vpow.pop %v2030
    %v2032 = vmul.f32 %v2022, 1.442695
    %v2033 = vpow.pop %v2032
    %v2034 = vmul.f32 %v2023, 1.442695
    %v2035 = vpow.pop %v2034
    %v2036 = vadd.f32 %v2025, 1.0
    %v2037 = vadd.f32 %v2027, 1.0
    %v2038 = vadd.f32 %v2029, 1.0
    %v2039 = vadd.f32 %v2031, 1.0
    %v2040 = vadd.f32 %v2033, 1.0
    %v2041 = vadd.f32 %v2035, 1.0
    %v2042 = vrcp.pop %v2036
    %v2043 = vmul.f32 %v2036, %v2042
    %v2044 = vsub.f32 1.0, %v2043
    %v2045 = vmul.f32 %v2042, %v2044
    %v2046 = vadd.f32 %v2042, %v2045
    %vm2047 = vweird.f32 %v2036
    %vm2048 = vweird.f32 %v2042
    %vm2049 = vmor %vm2047, %vm2048
    %v2050 = vsel %vm2049, %v2042, %v2046
    %v2051 = vand.u32 2147483647, %v2036
    %vm2052 = vcmp.eq.f32.partialorder %v2051, 8.507059e+37
    %v2053 = vand.u32 %v2036, 2147483648
    %v2054 = vor.u32 1.1754944e-38, %v2053
    %v2055 = vsel %vm2052, %v2054, %v2050
    %v2056 = vmul.f32 1.0, %v2055
    %v2057 = vrcp.pop %v2037
    %v2058 = vmul.f32 %v2037, %v2057
    %v2059 = vsub.f32 1.0, %v2058
    %v2060 = vmul.f32 %v2057, %v2059
    %v2061 = vadd.f32 %v2057, %v2060
    %vm2062 = vweird.f32 %v2037
    %vm2063 = vweird.f32 %v2057
    %vm2064 = vmor %vm2062, %vm2063
    %v2065 = vsel %vm2064, %v2057, %v2061
    %v2066 = vand.u32 2147483647, %v2037
    %vm2067 = vcmp.eq.f32.partialorder %v2066, 8.507059e+37
    %v2068 = vand.u32 %v2037, 2147483648
    %v2069 = vor.u32 1.1754944e-38, %v2068
    %v2070 = vsel %vm2067, %v2069, %v2065
    %v2071 = vmul.f32 1.0, %v2070
    %v2072 = vrcp.pop %v2038
    %v2073 = vmul.f32 %v2038, %v2072
    %v2074 = vsub.f32 1.0, %v2073
    %v2075 = vmul.f32 %v2072, %v2074
    %v2076 = vadd.f32 %v2072, %v2075
    %vm2077 = vweird.f32 %v2038
    %vm2078 = vweird.f32 %v2072
    %vm2079 = vmor %vm2077, %vm2078
    %v2080 = vsel %vm2079, %v2072, %v2076
    %v2081 = vand.u32 2147483647, %v2038
    %vm2082 = vcmp.eq.f32.partialorder %v2081, 8.507059e+37
    %v2083 = vand.u32 %v2038, 2147483648
    %v2084 = vor.u32 1.1754944e-38, %v2083
    %v2085 = vsel %vm2082, %v2084, %v2080
    %v2086 = vmul.f32 1.0, %v2085
    %v2087 = vrcp.pop %v2039
    %v2088 = vmul.f32 %v2039, %v2087
    %v2089 = vsub.f32 1.0, %v2088
    %v2090 = vmul.f32 %v2087, %v2089
    %v2091 = vadd.f32 %v2087, %v2090
    %vm2092 = vweird.f32 %v2039
    %vm2093 = vweird.f32 %v2087
    %vm2094 = vmor %vm2092, %vm2093
    %v2095 = vsel %vm2094, %v2087, %v2091
    %v2096 = vand.u32 2147483647, %v2039
    %vm2097 = vcmp.eq.f32.partialorder %v2096, 8.507059e+37
    %v2098 = vand.u32 %v2039, 2147483648
    %v2099 = vor.u32 1.1754944e-38, %v2098
    %v2100 = vsel %vm2097, %v2099, %v2095
    %v2101 = vmul.f32 1.0, %v2100
    %v2102 = vrcp.pop %v2040
    %v2103 = vmul.f32 %v2040, %v2102
    %v2104 = vsub.f32 1.0, %v2103
    %v2105 = vmul.f32 %v2102, %v2104
    %v2106 = vadd.f32 %v2102, %v2105
    %vm2107 = vweird.f32 %v2040
    %vm2108 = vweird.f32 %v2102
    %vm2109 = vmor %vm2107, %vm2108
    %v2110 = vsel %vm2109, %v2102, %v2106
    %v2111 = vand.u32 2147483647, %v2040
    %vm2112 = vcmp.eq.f32.partialorder %v2111, 8.507059e+37
    %v2113 = vand.u32 %v2040, 2147483648
    %v2114 = vor.u32 1.1754944e-38, %v2113
    %v2115 = vsel %vm2112, %v2114, %v2110
    %v2116 = vmul.f32 1.0, %v2115
    %v2117 = vrcp.pop %v2041
    %v2118 = vmul.f32 %v2041, %v2117
    %v2119 = vsub.f32 1.0, %v2118
    %v2120 = vmul.f32 %v2117, %v2119
    %v2121 = vadd.f32 %v2117, %v2120
    %vm2122 = vweird.f32 %v2041
    %vm2123 = vweird.f32 %v2117
    %vm2124 = vmor %vm2122, %vm2123
    %v2125 = vsel %vm2124, %v2117, %v2121
    %v2126 = vand.u32 2147483647, %v2041
    %vm2127 = vcmp.eq.f32.partialorder %v2126, 8.507059e+37
    %v2128 = vand.u32 %v2041, 2147483648
    %v2129 = vor.u32 1.1754944e-38, %v2128
    %v2130 = vsel %vm2127, %v2129, %v2125
    %v2131 = vmul.f32 1.0, %v2130
    %v2132 = vtanh.pop %v2014
    %v2133 = vtanh.pop %v2016
    %v2134 = vmul.f32 %v2071, %v1494
    %v2135 = vmul.f32 %v2116, %v1495
    %v2136 = vmul.f32 %v2056, %v2132
    %v2137 = vmul.f32 %v2101, %v2133
    %v2138 = vadd.f32 %v2134, %v2136
    %v2139 = vadd.f32 %v2135, %v2137
    %v2140 = vtanh.pop %v2138
    %v2141 = vtanh.pop %v2139
    %v2142 = vmul.f32 %v2086, %v2140
    %v2143 = vmul.f32 %v2131, %v2141
    %s2144 = sld [smem:[#allocation2]]
    %s2145 = sadd.f32 %s2144, 1.0
    %v2146 = vstv %s2145
    %v2147 = vrcp.pop %v2146
    %v2148 = vmul.f32 %v2146, %v2147
    %v2149 = vsub.f32 1.0, %v2148
    %v2150 = vmul.f32 %v2147, %v2149
    %v2151 = vadd.f32 %v2147, %v2150
    %vm2152 = vweird.f32 %v2146
    %vm2153 = vweird.f32 %v2147
    %vm2154 = vmor %vm2152, %vm2153
    %v2155 = vsel %vm2154, %v2147, %v2151
    %v2156 = vand.u32 2147483647, %v2146
    %vm2157 = vcmp.eq.f32.partialorder %v2156, 8.507059e+37
    %v2158 = vand.u32 %v2146, 2147483648
    %v2159 = vor.u32 1.1754944e-38, %v2158
    %v2160 = vsel %vm2157, %v2159, %v2155
    %s2161 = vtos %v2160
    %v2162 = vstv %s2144
    %v2163 = vmul.f32 %v2162, %v2142
    %v2164 = vmul.f32 %v2162, %v2143
    %v2165 = vadd.f32 %v1491, %v2163
    %v2166 = vadd.f32 %v1492, %v2164
    %v2167 = vstv %s2161
    %v2168 = vmul.f32 %v2165, %v2167
    %v2169 = vmul.f32 %v2166, %v2167
    %s2170 = scalar_lea.vmem [#allocation12], 32
    %2171 = vst [vmem:[%s2170] sm:$0xff] %v2168
    %2172 = vst [vmem:[%s2170 + $0x8] sm:$0xff] %v2169
    %v2173 = vmul.f32 %v2162, %v2138
    %v2174 = vmul.f32 %v2162, %v2139
    %v2175 = vadd.f32 %v1494, %v2173
    %v2176 = vadd.f32 %v1495, %v2174
    %v2177 = vmul.f32 %v2175, %v2167
    %v2178 = vmul.f32 %v2176, %v2167
    %s2179 = scalar_lea.vmem [#allocation13], 32
    %2180 = vst [vmem:[%s2179] sm:$0xff] %v2177
    %2181 = vst [vmem:[%s2179 + $0x8] sm:$0xff] %v2178
    // Predicated region
    $region46: #{tpu_custom_call.1} parent=1 // pred_check
      _
    $region47: #{tpu_custom_call.1} parent=1 // pred_check_branch
      %2183 = sbr.rel (0) target = $region49
    $region48: #{tpu_custom_call.1} parent=1 // pred_region
      %2185 = vsyncadd [#allocation5], 0
      %s2186 = sshll.u32 [#allocation12], 4
      %s2187 = int_to_ptr.vmem [resolvable:$true] %s2186
      %s2188 = sshll.u32 %s6, 4
      %s2189 = int_to_ptr.hbm [resolvable:$true] %s2188
      %2194 = dma.vmem_to_hbm [thread:$0]  %s2187, 768, %s2189, [#allocation5], 128, 128, 8
    $region49: #{tpu_custom_call.1} parent=1 // pred_fallthru
      _
    // Predicated region
    $region50: #{tpu_custom_call.1} parent=1 // pred_check
      _
    $region51: #{tpu_custom_call.1} parent=1 // pred_check_branch
      %2196 = sbr.rel (0) target = $region53
    $region52: #{tpu_custom_call.1} parent=1 // pred_region
      %2198 = vsyncadd [#allocation14], 0
      %s2199 = sshll.u32 [#allocation13], 4
      %s2200 = int_to_ptr.vmem [resolvable:$true] %s2199
      %s2201 = sshll.u32 %s7, 4
      %s2202 = int_to_ptr.hbm [resolvable:$true] %s2201
      %2207 = dma.vmem_to_hbm [thread:$0]  %s2200, 768, %s2202, [#allocation14], 128, 128, 8
    $region53: #{tpu_custom_call.1} parent=1 // pred_fallthru
      _
    // Predicated region
    $region54: #{tpu_custom_call.1} parent=1 // pred_check
      _
    $region55: #{tpu_custom_call.1} parent=1 // pred_check_branch
      %2209 = sbr.rel (0) target = $region57
    $region56: #{tpu_custom_call.1} parent=1 // pred_region
      %2211 = dma.done [#allocation5], 768
    $region57: #{tpu_custom_call.1} parent=1 // pred_fallthru
      _
    // Predicated region
    $region58: #{tpu_custom_call.1} parent=1 // pred_check
      _
    $region59: #{tpu_custom_call.1} parent=1 // pred_check_branch
      %2213 = sbr.rel (0) target = $region61
    $region60: #{tpu_custom_call.1} parent=1 // pred_region
      %2215 = dma.done [#allocation14], 768
    $region61: #{tpu_custom_call.1} parent=1 // pred_fallthru
      _
    %2216 = vsyncpa [#allocation4], 1
    %2217 = vsyncpa [#allocation7], 1
    %2218 = vsyncpa [#allocation10], 1
    %2219 = vsyncpa [#allocation5], 1
    %2220 = vsyncpa [#allocation14], 1

</llo_original>
